<compile_context>
chip_gen: v6e
topology: v6e:2x2x1
jax: 0.10.0
libtpu: 0.0.40
codegen_flags: <defaults>
</compile_context>

<pallas_src>
import math
import functools

import jax
import jax.numpy as jnp
from jax.experimental import pallas as pl
from jax.experimental.pallas import tpu as pltpu

EPS = 1e-5                    # PyTorch nn.LayerNorm default eps
MXU_DTYPE = jnp.bfloat16      # matmul operand / intermediate activation dtype


def _vmem_limit_bytes():
    # 96 MiB on v5e/v6e (128 MiB VMEM), 48 MiB on v7x (64 MiB VMEM), safe fallback.
    try:
        cap = int(pltpu.get_tpu_info().vmem_capacity_bytes)
    except Exception:
        cap = 64 * 1024 * 1024
    return min(cap * 3 // 4, 96 * 1024 * 1024)


VMEM_LIMIT = _vmem_limit_bytes()


# ----------------------------- tiling helpers -------------------------------
def _tile(dim, target, align):
    """Largest tile <= target that evenly divides dim and is a multiple of
    `align` (else fall back to the full dim, which is always legal)."""
    if dim <= target:
        return dim
    for cand in range(target, align - 1, -1):
        if dim % cand == 0 and cand % align == 0:
            return cand
    return dim


def _divisor_tile(dim, target):
    """Largest divisor of dim that is <= target."""
    t = max(1, min(dim, target))
    for cand in range(t, 0, -1):
        if dim % cand == 0:
            return cand
    return 1


# ----------------------------- exact-ish GELU --------------------------------
# TODO(synk): swap the erf polynomial for jax.lax.erf once Mosaic guarantees an
# erf lowering; polynomial max abs error ~1.5e-7 (A&S 7.1.26), i.e. ~f32 eps.
def _erf(z):
    a1, a2, a3, a4, a5 = 0.254829592, -0.284496736, 1.421413741, -1.453152027, 1.061405429
    pc = 0.3275911
    az = jnp.abs(z)
    t = 1.0 / (1.0 + pc * az)
    poly = ((((a5 * t + a4) * t + a3) * t + a2) * t + a1) * t
    y = 1.0 - poly * jnp.exp(-az * az)
    return jnp.where(z >= 0, y, -y)


def _gelu_exact(x):
    return 0.5 * x * (1.0 + _erf(x * 0.7071067811865476))


# --------------------------- LayerNorm + matmul -------------------------------
def _ln_matmul_kernel(x_ref, g_ref, b_ref, w_ref, bias_ref, o_ref, y_ref):
    j = pl.program_id(1)

    # Normalized bf16 activation computed once per row tile (j == 0) and cached
    # in VMEM; re-used for every output-column tile of that row tile.
    @pl.when(j == 0)
    def _():
        x = x_ref[...].astype(jnp.float32)
        mu = jnp.mean(x, axis=-1, keepdims=True)
        var = jnp.mean(jnp.square(x - mu), axis=-1, keepdims=True)
        y = (x - mu) * jax.lax.rsqrt(var + EPS)
        y_ref[...] = (y * g_ref[...] + b_ref[...]).astype(y_ref.dtype)

    acc = jnp.dot(y_ref[...], w_ref[...], preferred_element_type=jnp.float32)
    o_ref[...] = (acc + bias_ref[...]).astype(o_ref.dtype)


def ln_matmul(x2d, gamma, beta, w, bias, out_dtype=MXU_DTYPE):
    """out = LayerNorm(x2d) @ w + bias.  w is pre-cast bf16."""
    M, K = x2d.shape
    Nout = w.shape[1]
    # Larger row tiles for narrow-K projections (amortize per-step overhead).
    tm_target = min(2048, max(512, (2 << 20) // max(K * 4, 1)))
    tm = _tile(M, tm_target, 8)
    tn = _tile(Nout, 512, 128)
    grid = (M // tm, Nout // tn)
    return pl.pallas_call(
        _ln_matmul_kernel,
        grid=grid,
        out_shape=jax.ShapeDtypeStruct((M, Nout), out_dtype),
        in_specs=[
            pl.BlockSpec((tm, K), lambda i, j: (i, 0)),
            pl.BlockSpec((1, K), lambda i, j: (0, 0)),
            pl.BlockSpec((1, K), lambda i, j: (0, 0)),
            pl.BlockSpec((K, tn), lambda i, j: (0, j)),
            pl.BlockSpec((1, tn), lambda i, j: (0, j)),
        ],
        out_specs=pl.BlockSpec((tm, tn), lambda i, j: (i, j)),
        scratch_shapes=[pltpu.VMEM((tm, K), MXU_DTYPE)],
        compiler_params=pltpu.CompilerParams(
            dimension_semantics=("parallel", "arbitrary"),
            vmem_limit_bytes=VMEM_LIMIT),
    )(x2d, gamma.reshape(1, K), beta.reshape(1, K), w, bias.reshape(1, Nout))


# -------------------- K-tiled matmul + bias + residual -----------------------
def _matmul_res_kernel(x_ref, w_ref, bias_ref, r_ref, o_ref, acc_ref):
    k = pl.program_id(2)

    @pl.when(k == 0)
    def _():
        acc_ref[...] = jnp.zeros_like(acc_ref)

    acc_ref[...] += jnp.dot(x_ref[...].astype(MXU_DTYPE), w_ref[...],
                            preferred_element_type=jnp.float32)

    @pl.when(k == pl.num_programs(2) - 1)
    def _():
        o_ref[...] = (acc_ref[...] + bias_ref[...]
                      + r_ref[...].astype(jnp.float32)).astype(o_ref.dtype)


def matmul_residual(x2d, w, bias, res2d, out_dtype=jnp.float32):
    """out = x2d @ w + bias + res2d, with K-accumulation in VMEM f32."""
    M, K = x2d.shape
    Nout = w.shape[1]
    xbytes = jnp.dtype(x2d.dtype).itemsize
    tm_target = min(2048, max(512, (2 << 20) // max(K * xbytes, 1)))
    tm = _tile(M, tm_target, 8)
    tn = _tile(Nout, 512, 128)
    tk = _tile(K, 512, 128)
    grid = (M // tm, Nout // tn, K // tk)
    return pl.pallas_call(
        _matmul_res_kernel,
        grid=grid,
        out_shape=jax.ShapeDtypeStruct((M, Nout), out_dtype),
        in_specs=[
            pl.BlockSpec((tm, tk), lambda i, j, k: (i, k)),
            pl.BlockSpec((tk, tn), lambda i, j, k: (k, j)),
            pl.BlockSpec((1, tn), lambda i, j, k: (0, j)),
            pl.BlockSpec((tm, tn), lambda i, j, k: (i, j)),
        ],
        out_specs=pl.BlockSpec((tm, tn), lambda i, j, k: (i, j)),
        scratch_shapes=[pltpu.VMEM((tm, tn), jnp.float32)],
        compiler_params=pltpu.CompilerParams(
            dimension_semantics=("parallel", "parallel", "arbitrary"),
            vmem_limit_bytes=VMEM_LIMIT),
    )(x2d, w, bias.reshape(1, Nout), res2d)


# ------------------ sr-patch reduction (LN1-fused strided conv) ---------------
def _sr_patch_kernel(x_ref, g_ref, b_ref, w_ref, bias_ref, o_ref, *, sr, C):
    # x_ref: (thp, sr, Ws, sr*C) f32   -- one block of patch-rows of x
    # w_ref: (sr*sr, C, C) bf16        -- sr conv weight, tap-major (kh, kw)
    # o_ref: (thp, Ws, C)              -- reduced tokens for those patch-rows
    g = g_ref[...]
    b = b_ref[...]
    acc = jnp.zeros(o_ref.shape, jnp.float32)
    for kh in range(sr):
        for kw in range(sr):
            tok = x_ref[:, kh, :, kw * C:(kw + 1) * C].astype(jnp.float32)
            mu = jnp.mean(tok, axis=-1, keepdims=True)
            var = jnp.mean(jnp.square(tok - mu), axis=-1, keepdims=True)
            y = (tok - mu) * jax.lax.rsqrt(var + EPS) * g + b
            acc = acc + jax.lax.dot_general(
                y.astype(MXU_DTYPE), w_ref[kh * sr + kw],
                (((2,), (0,)), ((), ())),
                preferred_element_type=jnp.float32)
    o_ref[...] = (acc + bias_ref[...]).astype(o_ref.dtype)


def sr_patch_matmul(x3, H, W, sr, ln_g, ln_b, w_g, bias):
    """Equivalent of sr-strided Conv2d applied to LayerNorm1(x), without any
    XLA transpose: x is viewed (free reshape) as (B*Hs, sr, Ws, sr*C)."""
    B, N, C = x3.shape
    Hs, Ws = H // sr, W // sr
    rows = B * Hs
    x4 = x3.reshape(rows, sr, Ws, sr * C)
    per_row = sr * Ws * sr * C * 4
    thp = _divisor_tile(rows, max(1, (4 << 20) // max(per_row, 1)))
    grid = (rows // thp,)
    out = pl.pallas_call(
        functools.partial(_sr_patch_kernel, sr=sr, C=C),
        grid=grid,
        out_shape=jax.ShapeDtypeStruct((rows, Ws, C), MXU_DTYPE),
        in_specs=[
            pl.BlockSpec((thp, sr, Ws, sr * C), lambda i: (i, 0, 0, 0)),
            pl.BlockSpec((1, C), lambda i: (0, 0)),
            pl.BlockSpec((1, C), lambda i: (0, 0)),
            pl.BlockSpec((sr * sr, C, C), lambda i: (0, 0, 0)),
            pl.BlockSpec((1, C), lambda i: (0, 0)),
        ],
        out_specs=pl.BlockSpec((thp, Ws, C), lambda i: (i, 0, 0)),
        compiler_params=pltpu.CompilerParams(
            dimension_semantics=("parallel",),
            vmem_limit_bytes=VMEM_LIMIT),
    )(x4, ln_g.reshape(1, C), ln_b.reshape(1, C), w_g, bias.reshape(1, C))
    return out.reshape(B * Hs * Ws, C)


# ----------------------------- attention -------------------------------------
def _attention_kernel(q_ref, kv_ref, o_ref, *, heads, head_dim, kv_offset):
    C = heads * head_dim
    scale = 1.0 / math.sqrt(head_dim)
    outs = []
    for h in range(heads):                       # heads are static & small
        q0 = h * head_dim
        k0 = kv_offset + h * head_dim
        v0 = kv_offset + C + h * head_dim
        qh = q_ref[0, :, q0:q0 + head_dim]       # (tq, d) bf16, read from ref
        kh = kv_ref[0, :, k0:k0 + head_dim]      # (Nk, d) bf16
        vh = kv_ref[0, :, v0:v0 + head_dim]      # (Nk, d) bf16
        s = jax.lax.dot_general(qh, kh, (((1,), (1,)), ((), ())),
                                preferred_element_type=jnp.float32) * scale
        s = s - jnp.max(s, axis=-1, keepdims=True)
        p = jnp.exp(s)
        p = p * pl.reciprocal(jnp.sum(p, axis=-1, keepdims=True), approx=True)
        outs.append(jnp.dot(p.astype(MXU_DTYPE), vh,
                            preferred_element_type=jnp.float32))       # (tq, d)
    # lane-dense (tq, C) context: matches PyTorch permute(0,2,1,3).reshape(...)
    o_ref[0] = jnp.concatenate(outs, axis=-1).astype(o_ref.dtype)


def attention(q_src, kv_src, heads, head_dim, *, kv_offset):
    # q_src: (B, Nq, Cq) bf16 (Q in channels [0:C]); kv_src: (B, Nk, Ckv) bf16
    # with K at [kv_offset:kv_offset+C] and V at [kv_offset+C:kv_offset+2C].
    B, Nq, Cq = q_src.shape
    Nk, Ckv = kv_src.shape[1], kv_src.shape[2]
    C = heads * head_dim
    tq = _tile(Nq, 512, 8)
    grid = (B, Nq // tq)
    # TODO(synk): for very large Nk add a flash-style Nk grid axis with
    # online-softmax m/l/acc scratch; Segformer's reduced Nk keeps this small.
    return pl.pallas_call(
        functools.partial(_attention_kernel, heads=heads, head_dim=head_dim,
                          kv_offset=kv_offset),
        grid=grid,
        out_shape=jax.ShapeDtypeStruct((B, Nq, C), MXU_DTYPE),
        in_specs=[
            pl.BlockSpec((1, tq, Cq), lambda b, i: (b, i, 0)),
            pl.BlockSpec((1, Nk, Ckv), lambda b, i: (b, 0, 0)),
        ],
        out_specs=pl.BlockSpec((1, tq, C), lambda b, i: (b, i, 0)),
        compiler_params=pltpu.CompilerParams(
            dimension_semantics=("parallel", "parallel"),
            vmem_limit_bytes=VMEM_LIMIT),
    )(q_src, kv_src)


# ------------------- depthwise 3x3 conv + GELU (row-tiled) -------------------
def _dwconv_kernel(x_ref, up_ref, dn_ref, w_ref, b_ref, o_ref):
    i = pl.program_id(1)
    n = pl.num_programs(1)
    x = x_ref[0].astype(jnp.float32)                      # (th, W, C)
    th, W, C = x.shape
    top = up_ref[0, 0].astype(jnp.float32) * (i > 0).astype(jnp.float32)
    bot = dn_ref[0, 0].astype(jnp.float32) * (i < n - 1).astype(jnp.float32)
    if th > 1:
        x_up = jnp.concatenate([top[None], x[:th - 1]], axis=0)   # rows h-1
        x_dn = jnp.concatenate([x[1:], bot[None]], axis=0)        # rows h+1
    else:
        x_up = top[None]
        x_dn = bot[None]
    w = w_ref[...].astype(jnp.float32)                    # (3, 3, C)
    col = jax.lax.broadcasted_iota(jnp.int32, (th, W, C), 1)
    left_edge = col == 0
    right_edge = col == W - 1

    def hconv(rows, dh):
        # 3 column taps via XLU rolls (no padded (W+2) buffer); edge columns
        # masked to zero to emulate zero padding.
        c = rows * w[dh, 1]
        lft = pltpu.roll(rows, 1, 1)            # out[w] = rows[w-1]
        c = c + jnp.where(left_edge, 0.0, lft) * w[dh, 0]
        rgt = pltpu.roll(rows, W - 1, 1)        # out[w] = rows[w+1]
        c = c + jnp.where(right_edge, 0.0, rgt) * w[dh, 2]
        return c

    acc = hconv(x_up, 0) + hconv(x, 1) + hconv(x_dn, 2)
    # GELU fused here (MixFFN: dense1 -> dwconv -> act -> dense2)
    o_ref[0] = _gelu_exact(acc + b_ref[...]).astype(o_ref.dtype)


def dwconv3x3_gelu(x_nhwc, w33c, bias):
    B, H, W, C = x_nhwc.shape
    row_bytes = W * C * jnp.dtype(x_nhwc.dtype).itemsize
    th = _divisor_tile(H, max(1, (2 << 20) // max(row_bytes, 1)))
    grid = (B, H // th)
    return pl.pallas_call(
        _dwconv_kernel,
        grid=grid,
        out_shape=jax.ShapeDtypeStruct((B, H, W, C), MXU_DTYPE),
        in_specs=[
            pl.BlockSpec((1, th, W, C), lambda b, i: (b, i, 0, 0)),
            # one-row halos above / below the tile (clamped at image edges,
            # zeroed inside the kernel) -- no host-side full-tensor pad.
            pl.BlockSpec((1, 1, W, C),
                         lambda b, i: (b, jnp.maximum(i * th - 1, 0), 0, 0)),
            pl.BlockSpec((1, 1, W, C),
                         lambda b, i: (b, jnp.minimum(i * th + th, H - 1), 0, 0)),
            pl.BlockSpec((3, 3, C), lambda b, i: (0, 0, 0)),
            pl.BlockSpec((1, C), lambda b, i: (0, 0)),
        ],
        out_specs=pl.BlockSpec((1, th, W, C), lambda b, i: (b, i, 0, 0)),
        compiler_params=pltpu.CompilerParams(
            dimension_semantics=("parallel", "parallel"),
            vmem_limit_bytes=VMEM_LIMIT),
    )(x_nhwc, x_nhwc, x_nhwc, w33c, bias.reshape(1, C))


# ----------------------------- SegformerLayer forward ------------------------
def segformer_layer_forward(p, x, H, W):
    B, N, C = x.shape
    heads = p["num_heads"]
    d = C // heads
    sr = p["sr_ratio"]
    x2d = x.reshape(B * N, C)

    # ---- efficient self-attention (LN1 fused into Q / patch / KV matmuls) ----
    if sr > 1:
        Hs, Ws = H // sr, W // sr
        Nr = Hs * Ws
        q2d = ln_matmul(x2d, p["ln1_g"], p["ln1_b"], p["q_w"], p["q_b"])
        # sr-strided conv over LN1(x) without an XLA transpose of x
        red = sr_patch_matmul(x, H, W, sr, p["ln1_g"], p["ln1_b"],
                              p["sr_w"], p["sr_b"])
        # post-reduction LayerNorm fused into the merged K/V projection
        kv2d = ln_matmul(red, p["sr_ln_g"], p["sr_ln_b"], p["kv_w"], p["kv_b"])
        ctx = attention(q2d.reshape(B, N, C), kv2d.reshape(B, Nr, 2 * C),
                        heads, d, kv_offset=0)
    else:
        # Q/K/V fused into one LN1-fused (C, 3C) matmul; the attention kernel
        # reads Q, K, V at static channel offsets of the packed tensor.
        qkv2d = ln_matmul(x2d, p["ln1_g"], p["ln1_b"], p["qkv_w"], p["qkv_b"])
        qkv3 = qkv2d.reshape(B, N, 3 * C)
        ctx = attention(qkv3, qkv3, heads, d, kv_offset=C)

    # attention output dense + residual with the ORIGINAL (pre-LN) input
    attn_out2d = matmul_residual(ctx.reshape(B * N, C), p["o_w"], p["o_b"],
                                 x2d, out_dtype=jnp.float32)

    # ---- MixFFN: (LN2 fused) dense1 -> dwconv+GELU -> dense2 + residual ----
    Cm = p["d1_w"].shape[1]
    h1 = ln_matmul(attn_out2d, p["ln2_g"], p["ln2_b"], p["d1_w"], p["d1_b"])
    dw = dwconv3x3_gelu(h1.reshape(B, H, W, Cm), p["dw_w"], p["dw_b"])
    out2d = matmul_residual(dw.reshape(B * N, Cm), p["d2_w"], p["d2_b"],
                            attn_out2d, out_dtype=jnp.float32)
    return out2d.reshape(B, N, C)


# ----------------------------- deterministic params --------------------------
def init_params(key, C, heads, sr, mlp_ratio):
    Cm = int(C * mlp_ratio)
    ks = jax.random.split(key, 24)

    def w(k, shape, scale=0.05):
        return (scale * jax.random.normal(k, shape)).astype(jnp.float32)

    q_w, q_b = w(ks[2], (C, C)), w(ks[3], (C,))
    k_w, k_b = w(ks[4], (C, C)), w(ks[5], (C,))
    v_w, v_b = w(ks[6], (C, C)), w(ks[7], (C,))
    p = {
        "num_heads": heads, "sr_ratio": sr,
        "ln1_g": 1.0 + w(ks[0], (C,)), "ln1_b": w(ks[1], (C,)),
        # weight matrices pre-cast to bf16 (MXU operands); biases stay f32
        "q_w": q_w.astype(MXU_DTYPE), "q_b": q_b,
        "kv_w": jnp.concatenate([k_w, v_w], axis=1).astype(MXU_DTYPE),
        "kv_b": jnp.concatenate([k_b, v_b], axis=0),
        "qkv_w": jnp.concatenate([q_w, k_w, v_w], axis=1).astype(MXU_DTYPE),
        "qkv_b": jnp.concatenate([q_b, k_b, v_b], axis=0),
        "o_w": w(ks[8], (C, C)).astype(MXU_DTYPE), "o_b": w(ks[9], (C,)),
        "ln2_g": 1.0 + w(ks[10], (C,)), "ln2_b": w(ks[11], (C,)),
        "d1_w": w(ks[12], (C, Cm)).astype(MXU_DTYPE), "d1_b": w(ks[13], (Cm,)),
        "dw_w": w(ks[14], (3, 3, Cm)), "dw_b": w(ks[15], (Cm,)),  # depthwise
        "d2_w": w(ks[16], (Cm, C)).astype(MXU_DTYPE), "d2_b": w(ks[17], (C,)),
    }
    if sr > 1:
        conv_w = w(ks[18], (C, C, sr, sr))  # PyTorch layout (out, in, kh, kw)
        # tap-major (kh, kw) stack of (C_in, C_out) matrices for the patch kernel
        p["sr_w"] = (jnp.transpose(conv_w, (2, 3, 1, 0))
                     .reshape(sr * sr, C, C).astype(MXU_DTYPE))
        p["sr_b"] = w(ks[19], (C,))
        p["sr_ln_g"] = 1.0 + w(ks[20], (C,))
        p["sr_ln_b"] = w(ks[21], (C,))
    return p


if __name__ == "__main__":
    key = jax.random.PRNGKey(0)
    kx, kp, kx2, kp2 = jax.random.split(key, 4)

    # ---- sr > 1 path (spatial-reduction attention), common Segformer stage ----
    B, H, W, C = 2, 16, 16, 32
    heads, sr, mlp_ratio = 2, 2, 4.0
    N = H * W
    x = jax.random.normal(kx, (B, N, C), dtype=jnp.float32)
    params = init_params(kp, C, heads, sr, mlp_ratio)
    out = segformer_layer_forward(params, x, H, W)
    jax.block_until_ready(out)
    assert out.shape == (B, N, C) and out.dtype == jnp.float32
    assert bool(jnp.all(jnp.isfinite(out)))

    # ---- sr == 1 path (fused QKV projection), last Segformer stage ----
    B1, H1, W1, C1 = 2, 8, 8, 64
    x1 = jax.random.normal(kx2, (B1, H1 * W1, C1), dtype=jnp.float32)
    params1 = init_params(kp2, C1, 2, 1, 4.0)
    out1 = segformer_layer_forward(params1, x1, H1, W1)
    jax.block_until_ready(out1)
    assert out1.shape == (B1, H1 * W1, C1) and out1.dtype == jnp.float32
    assert bool(jnp.all(jnp.isfinite(out1)))

    print("KERNEL_OK")
</pallas_src>

<mosaic_0001>
module attributes {stable_mosaic.version = 11 : i64} {
  func.func @_ln_matmul_kernel(%arg0: i32, %arg1: i32, %arg2: memref<512x32xf32, #tpu.memory_space<vmem>>, %arg3: memref<1x32xf32, #tpu.memory_space<vmem>>, %arg4: memref<1x32xf32, #tpu.memory_space<vmem>>, %arg5: memref<32x32xbf16, #tpu.memory_space<vmem>>, %arg6: memref<1x32xf32, #tpu.memory_space<vmem>>, %arg7: memref<512x32xbf16, #tpu.memory_space<vmem>>, %arg8: memref<512x32xbf16, #tpu.memory_space<vmem>>) attributes {dimension_semantics = [#tpu.dimension_semantics<parallel>, #tpu.dimension_semantics<arbitrary>], iteration_bounds = array<i64: 1, 1>, scalar_prefetch = 0 : i64, scratch_operands = 1 : i64, tpu.core_type = #tpu.core_type<tc>, window_params = [{transform_indices = @transform_0, window_bounds = array<i64: 512, 32>}, {pipeline_mode = #tpu.pipeline_mode<synchronous>, transform_indices = @transform_1, window_bounds = array<i64: 1, 32>}, {pipeline_mode = #tpu.pipeline_mode<synchronous>, transform_indices = @transform_2, window_bounds = array<i64: 1, 32>}, {transform_indices = @transform_3, window_bounds = array<i64: 32, 32>}, {transform_indices = @transform_4, window_bounds = array<i64: 1, 32>}, {transform_indices = @transform_5, window_bounds = array<i64: 512, 32>}]} {
    %c0_i32 = arith.constant 0 : i32
    %0 = arith.cmpi eq, %arg1, %c0_i32 : i32
    %1 = arith.extui %0 : i1 to i32
    %c0_i32_0 = arith.constant 0 : i32
    %2 = arith.cmpi ne, %1, %c0_i32_0 : i32
    scf.if %2 {
      %c0_8 = arith.constant 0 : index
      %c0_9 = arith.constant 0 : index
      %11 = vector.load %arg2[%c0_8, %c0_9] : memref<512x32xf32, #tpu.memory_space<vmem>>, vector<512x32xf32>
      %cst_10 = arith.constant dense<0.000000e+00> : vector<512xf32>
      %12 = vector.multi_reduction <add>, %11, %cst_10 [1] : vector<512x32xf32> to vector<512xf32>
      %13 = vector.shape_cast %12 : vector<512xf32> to vector<512x1xf32>
      %cst_11 = arith.constant 3.200000e+01 : f32
      %14 = vector.broadcast %cst_11 : f32 to vector<512x1xf32>
      %15 = arith.divf %13, %14 : vector<512x1xf32>
      %16 = vector.broadcast %15 : vector<512x1xf32> to vector<512x32xf32>
      %17 = arith.subf %11, %16 : vector<512x32xf32>
      %18 = arith.mulf %17, %17 : vector<512x32xf32>
      %cst_12 = arith.constant dense<0.000000e+00> : vector<512xf32>
      %19 = vector.multi_reduction <add>, %18, %cst_12 [1] : vector<512x32xf32> to vector<512xf32>
      %20 = vector.shape_cast %19 : vector<512xf32> to vector<512x1xf32>
      %cst_13 = arith.constant 3.200000e+01 : f32
      %21 = vector.broadcast %cst_13 : f32 to vector<512x1xf32>
      %22 = arith.divf %20, %21 : vector<512x1xf32>
      %23 = vector.broadcast %15 : vector<512x1xf32> to vector<512x32xf32>
      %24 = arith.subf %11, %23 : vector<512x32xf32>
      %cst_14 = arith.constant 9.99999974E-6 : f32
      %25 = vector.broadcast %cst_14 : f32 to vector<512x1xf32>
      %26 = arith.addf %22, %25 : vector<512x1xf32>
      %27 = math.rsqrt %26 : vector<512x1xf32>
      %28 = vector.broadcast %27 : vector<512x1xf32> to vector<512x32xf32>
      %29 = arith.mulf %24, %28 : vector<512x32xf32>
      %c0_15 = arith.constant 0 : index
      %c0_16 = arith.constant 0 : index
      %30 = vector.load %arg3[%c0_15, %c0_16] : memref<1x32xf32, #tpu.memory_space<vmem>>, vector<1x32xf32>
      %31 = vector.broadcast %30 : vector<1x32xf32> to vector<512x32xf32>
      %32 = arith.mulf %29, %31 : vector<512x32xf32>
      %c0_17 = arith.constant 0 : index
      %c0_18 = arith.constant 0 : index
      %33 = vector.load %arg4[%c0_17, %c0_18] : memref<1x32xf32, #tpu.memory_space<vmem>>, vector<1x32xf32>
      %34 = vector.broadcast %33 : vector<1x32xf32> to vector<512x32xf32>
      %35 = arith.addf %32, %34 : vector<512x32xf32>
      %36 = arith.truncf %35 : vector<512x32xf32> to vector<512x32xbf16>
      %c0_19 = arith.constant 0 : index
      %c0_20 = arith.constant 0 : index
      %37 = vector.load %arg8[%c0_19, %c0_20] : memref<512x32xbf16, #tpu.memory_space<vmem>>, vector<512x32xbf16>
      tpu.vector_store %arg8[%c0_19, %c0_20], %36 {strides = array<i32>} : memref<512x32xbf16, #tpu.memory_space<vmem>>, vector<512x32xbf16>,
    } else {
    }
    %c0 = arith.constant 0 : index
    %c0_1 = arith.constant 0 : index
    %3 = vector.load %arg8[%c0, %c0_1] : memref<512x32xbf16, #tpu.memory_space<vmem>>, vector<512x32xbf16>
    %c0_2 = arith.constant 0 : index
    %c0_3 = arith.constant 0 : index
    %4 = vector.load %arg5[%c0_2, %c0_3] : memref<32x32xbf16, #tpu.memory_space<vmem>>, vector<32x32xbf16>
    %cst = arith.constant dense<0.000000e+00> : vector<512x32xf32>
    %5 = tpu.matmul %3, %4, %cst {dimension_numbers = #tpu.dot_dimension_numbers<[1], [0], [0], [1], [0, 0, 1, 1], [], []>} : vector<512x32xbf16>, vector<32x32xbf16>, vector<512x32xf32> -> vector<512x32xf32>
    %c0_4 = arith.constant 0 : index
    %c0_5 = arith.constant 0 : index
    %6 = vector.load %arg6[%c0_4, %c0_5] : memref<1x32xf32, #tpu.memory_space<vmem>>, vector<1x32xf32>
    %7 = vector.broadcast %6 : vector<1x32xf32> to vector<512x32xf32>
    %8 = arith.addf %5, %7 : vector<512x32xf32>
    %9 = arith.truncf %8 : vector<512x32xf32> to vector<512x32xbf16>
    %c0_6 = arith.constant 0 : index
    %c0_7 = arith.constant 0 : index
    %10 = vector.load %arg7[%c0_6, %c0_7] : memref<512x32xbf16, #tpu.memory_space<vmem>>, vector<512x32xbf16>
    tpu.vector_store %arg7[%c0_6, %c0_7], %9 {strides = array<i32>} : memref<512x32xbf16, #tpu.memory_space<vmem>>, vector<512x32xbf16>,
    return
  }
  func.func @transform_0(%arg0: i32, %arg1: i32) -> (i32, i32) {
    %c0_i32 = arith.constant 0 : i32
    %c0_i32_0 = arith.constant 0 : i32
    return %arg0, %c0_i32 : i32, i32
  }
  func.func @transform_1(%arg0: i32, %arg1: i32) -> (i32, i32) {
    %c0_i32 = arith.constant 0 : i32
    %c0_i32_0 = arith.constant 0 : i32
    %c0_i32_1 = arith.constant 0 : i32
    return %c0_i32, %c0_i32_0 : i32, i32
  }
  func.func @transform_2(%arg0: i32, %arg1: i32) -> (i32, i32) {
    %c0_i32 = arith.constant 0 : i32
    %c0_i32_0 = arith.constant 0 : i32
    %c0_i32_1 = arith.constant 0 : i32
    return %c0_i32, %c0_i32_0 : i32, i32
  }
  func.func @transform_3(%arg0: i32, %arg1: i32) -> (i32, i32) {
    %c0_i32 = arith.constant 0 : i32
    %c0_i32_0 = arith.constant 0 : i32
    return %c0_i32, %arg1 : i32, i32
  }
  func.func @transform_4(%arg0: i32, %arg1: i32) -> (i32, i32) {
    %c0_i32 = arith.constant 0 : i32
    %c0_i32_0 = arith.constant 0 : i32
    return %c0_i32, %arg1 : i32, i32
  }
  func.func @transform_5(%arg0: i32, %arg1: i32) -> (i32, i32) {
    %c0_i32 = arith.constant 0 : i32
    return %arg0, %arg1 : i32, i32
  }
}

</mosaic_0001>

<llo_original>
// kernel: tpu_custom_call.1
$region0: #{tpu_custom_call.1}
  #allocation0 [shape = 'u32[]', space=smem, size = 0x4, offset = 0x4, fixed_abs, tag = 'smem constant byte address 0x4 - core index']
  #allocation1 [shape = 'u32[144,128]{1,0:T(1,128)}', space=vmem, size = 0x12000, scoped, tag = 'internal scratch']
  #allocation2 [shape = 'bf16[512,32]{1,0:T(8,128)(2,1)}', space=vmem, size = 0x20000, scoped, tag = 'scratch operand']
  %s0 = inlined_call_operand.vmem [shape: f32[512,32], index: 0, kind: input, shape index: {}]
  %s1 = inlined_call_operand.vmem [shape: f32[1,32], index: 1, kind: input, shape index: {}]
  %s2 = inlined_call_operand.vmem [shape: f32[1,32], index: 2, kind: input, shape index: {}]
  %s3 = inlined_call_operand.vmem [shape: bf16[32,32], index: 3, kind: input, shape index: {}]
  %s4 = inlined_call_operand.vmem [shape: f32[1,32], index: 4, kind: input, shape index: {}]
  %s5 = inlined_call_operand.vmem [shape: bf16[512,32], index: 5, kind: output, shape index: {}]
  %s6 = sld [smem:[#allocation0]]
  $region34: #{tpu_custom_call.1} parent=0
    _
  %s8 = ssub.s32 1, %s6
  %s9 = scalar_select 0, %s8, %s6
  // Predicated region
  $region2: #{tpu_custom_call.1} parent=0 // pred_check
    _
  $region3: #{tpu_custom_call.1} parent=0 // pred_check_branch
    %11 = sbr.rel (0) target = $region5
  $region4: #{tpu_custom_call.1} parent=0 // pred_region
    _
  $region5: #{tpu_custom_call.1} parent=0 // pred_fallthru
    _
  // Predicated region
  $region6: #{tpu_custom_call.1} parent=0 // pred_check
    _
  $region7: #{tpu_custom_call.1} parent=0 // pred_check_branch
    %13 = sbr.rel (0) target = $region9
  $region8: #{tpu_custom_call.1} parent=0 // pred_region
    _
  $region9: #{tpu_custom_call.1} parent=0 // pred_fallthru
    _
  // Predicated region
  $region10: #{tpu_custom_call.1} parent=0 // pred_check
    _
  $region11: #{tpu_custom_call.1} parent=0 // pred_check_branch
    %15 = sbr.rel (0) target = $region13
  $region12: #{tpu_custom_call.1} parent=0 // pred_region
    _
  $region13: #{tpu_custom_call.1} parent=0 // pred_fallthru
    _
  // Predicated region
  $region14: #{tpu_custom_call.1} parent=0 // pred_check
    _
  $region15: #{tpu_custom_call.1} parent=0 // pred_check_branch
    %17 = sbr.rel (0) target = $region17
  $region16: #{tpu_custom_call.1} parent=0 // pred_region
    _
  $region17: #{tpu_custom_call.1} parent=0 // pred_fallthru
    _
  // Predicated region
  $region18: #{tpu_custom_call.1} parent=0 // pred_check
    _
  $region19: #{tpu_custom_call.1} parent=0 // pred_check_branch
    %19 = sbr.rel (0) target = $region21
  $region20: #{tpu_custom_call.1} parent=0 // pred_region
    _
  $region21: #{tpu_custom_call.1} parent=0 // pred_fallthru
    _
  %p21 = scmp.eq.s32.totalorder 0, 0
  // Predicated region
  $region22: #{tpu_custom_call.1} parent=0 // pred_check
    %p22 = pneg %p21
  $region23: #{tpu_custom_call.1} parent=0 // pred_check_branch
    %24 = sbr.rel (%p22) target = $region25
  $region24: #{tpu_custom_call.1} parent=0 // pred_region
    %v25 = vld [vmem:[%s0] sm:$0xff]
    %v26 = vld [vmem:[%s0 + $0x8] sm:$0xff]
    %v27 = vld [vmem:[%s0 + $0x10] sm:$0xff]
    %v28 = vld [vmem:[%s0 + $0x18] sm:$0xff]
    %v29 = vld [vmem:[%s0 + $0x20] sm:$0xff]
    %v30 = vld [vmem:[%s0 + $0x28] sm:$0xff]
    %v31 = vld [vmem:[%s0 + $0x30] sm:$0xff]
    %v32 = vld [vmem:[%s0 + $0x38] sm:$0xff]
    %v33 = vld [vmem:[%s0 + $0x40] sm:$0xff]
    %v34 = vld [vmem:[%s0 + $0x48] sm:$0xff]
    %v35 = vld [vmem:[%s0 + $0x50] sm:$0xff]
    %v36 = vld [vmem:[%s0 + $0x58] sm:$0xff]
    %v37 = vld [vmem:[%s0 + $0x60] sm:$0xff]
    %v38 = vld [vmem:[%s0 + $0x68] sm:$0xff]
    %v39 = vld [vmem:[%s0 + $0x70] sm:$0xff]
    %v40 = vld [vmem:[%s0 + $0x78] sm:$0xff]
    %v41 = vld [vmem:[%s0 + $0x80] sm:$0xff]
    %v42 = vld [vmem:[%s0 + $0x88] sm:$0xff]
    %v43 = vld [vmem:[%s0 + $0x90] sm:$0xff]
    %v44 = vld [vmem:[%s0 + $0x98] sm:$0xff]
    %v45 = vld [vmem:[%s0 + $0xa0] sm:$0xff]
    %v46 = vld [vmem:[%s0 + $0xa8] sm:$0xff]
    %v47 = vld [vmem:[%s0 + $0xb0] sm:$0xff]
    %v48 = vld [vmem:[%s0 + $0xb8] sm:$0xff]
    %v49 = vld [vmem:[%s0 + $0xc0] sm:$0xff]
    %v50 = vld [vmem:[%s0 + $0xc8] sm:$0xff]
    %v51 = vld [vmem:[%s0 + $0xd0] sm:$0xff]
    %v52 = vld [vmem:[%s0 + $0xd8] sm:$0xff]
    %v53 = vld [vmem:[%s0 + $0xe0] sm:$0xff]
    %v54 = vld [vmem:[%s0 + $0xe8] sm:$0xff]
    %v55 = vld [vmem:[%s0 + $0xf0] sm:$0xff]
    %v56 = vld [vmem:[%s0 + $0xf8] sm:$0xff]
    %v57 = vld [vmem:[%s0 + $0x100] sm:$0xff]
    %v58 = vld [vmem:[%s0 + $0x108] sm:$0xff]
    %v59 = vld [vmem:[%s0 + $0x110] sm:$0xff]
    %v60 = vld [vmem:[%s0 + $0x118] sm:$0xff]
    %v61 = vld [vmem:[%s0 + $0x120] sm:$0xff]
    %v62 = vld [vmem:[%s0 + $0x128] sm:$0xff]
    %v63 = vld [vmem:[%s0 + $0x130] sm:$0xff]
    %v64 = vld [vmem:[%s0 + $0x138] sm:$0xff]
    %v65 = vld [vmem:[%s0 + $0x140] sm:$0xff]
    %v66 = vld [vmem:[%s0 + $0x148] sm:$0xff]
    %v67 = vld [vmem:[%s0 + $0x150] sm:$0xff]
    %v68 = vld [vmem:[%s0 + $0x158] sm:$0xff]
    %v69 = vld [vmem:[%s0 + $0x160] sm:$0xff]
    %v70 = vld [vmem:[%s0 + $0x168] sm:$0xff]
    %v71 = vld [vmem:[%s0 + $0x170] sm:$0xff]
    %v72 = vld [vmem:[%s0 + $0x178] sm:$0xff]
    %v73 = vld [vmem:[%s0 + $0x180] sm:$0xff]
    %v74 = vld [vmem:[%s0 + $0x188] sm:$0xff]
    %v75 = vld [vmem:[%s0 + $0x190] sm:$0xff]
    %v76 = vld [vmem:[%s0 + $0x198] sm:$0xff]
    %v77 = vld [vmem:[%s0 + $0x1a0] sm:$0xff]
    %v78 = vld [vmem:[%s0 + $0x1a8] sm:$0xff]
    %v79 = vld [vmem:[%s0 + $0x1b0] sm:$0xff]
    %v80 = vld [vmem:[%s0 + $0x1b8] sm:$0xff]
    %v81 = vld [vmem:[%s0 + $0x1c0] sm:$0xff]
    %v82 = vld [vmem:[%s0 + $0x1c8] sm:$0xff]
    %v83 = vld [vmem:[%s0 + $0x1d0] sm:$0xff]
    %v84 = vld [vmem:[%s0 + $0x1d8] sm:$0xff]
    %v85 = vld [vmem:[%s0 + $0x1e0] sm:$0xff]
    %v86 = vld [vmem:[%s0 + $0x1e8] sm:$0xff]
    %v87 = vld [vmem:[%s0 + $0x1f0] sm:$0xff]
    %v88 = vld [vmem:[%s0 + $0x1f8] sm:$0xff]
    %vm89 = vcmask 261120
    %v90 = vsel %vm89, %v25, 0.0
    %91 = vadd.xlane.f32.xlu0 %v90
    %v92 = vpop.xlane.xlu0 %91
    %v93 = vsel %vm89, %v26, 0.0
    %94 = vadd.xlane.f32.xlu0 %v93
    %v95 = vpop.xlane.xlu0 %94
    %v96 = vsel %vm89, %v27, 0.0
    %97 = vadd.xlane.f32.xlu0 %v96
    %v98 = vpop.xlane.xlu0 %97
    %v99 = vsel %vm89, %v28, 0.0
    %100 = vadd.xlane.f32.xlu0 %v99
    %v101 = vpop.xlane.xlu0 %100
    %v102 = vsel %vm89, %v29, 0.0
    %103 = vadd.xlane.f32.xlu0 %v102
    %v104 = vpop.xlane.xlu0 %103
    %v105 = vsel %vm89, %v30, 0.0
    %106 = vadd.xlane.f32.xlu0 %v105
    %v107 = vpop.xlane.xlu0 %106
    %v108 = vsel %vm89, %v31, 0.0
    %109 = vadd.xlane.f32.xlu0 %v108
    %v110 = vpop.xlane.xlu0 %109
    %v111 = vsel %vm89, %v32, 0.0
    %112 = vadd.xlane.f32.xlu0 %v111
    %v113 = vpop.xlane.xlu0 %112
    %v114 = vsel %vm89, %v33, 0.0
    %115 = vadd.xlane.f32.xlu0 %v114
    %v116 = vpop.xlane.xlu0 %115
    %v117 = vsel %vm89, %v34, 0.0
    %118 = vadd.xlane.f32.xlu0 %v117
    %v119 = vpop.xlane.xlu0 %118
    %v120 = vsel %vm89, %v35, 0.0
    %121 = vadd.xlane.f32.xlu0 %v120
    %v122 = vpop.xlane.xlu0 %121
    %v123 = vsel %vm89, %v36, 0.0
    %124 = vadd.xlane.f32.xlu0 %v123
    %v125 = vpop.xlane.xlu0 %124
    %v126 = vsel %vm89, %v37, 0.0
    %127 = vadd.xlane.f32.xlu0 %v126
    %v128 = vpop.xlane.xlu0 %127
    %v129 = vsel %vm89, %v38, 0.0
    %130 = vadd.xlane.f32.xlu0 %v129
    %v131 = vpop.xlane.xlu0 %130
    %v132 = vsel %vm89, %v39, 0.0
    %133 = vadd.xlane.f32.xlu0 %v132
    %v134 = vpop.xlane.xlu0 %133
    %v135 = vsel %vm89, %v40, 0.0
    %136 = vadd.xlane.f32.xlu0 %v135
    %v137 = vpop.xlane.xlu0 %136
    %v138 = vsel %vm89, %v41, 0.0
    %139 = vadd.xlane.f32.xlu0 %v138
    %v140 = vpop.xlane.xlu0 %139
    %v141 = vsel %vm89, %v42, 0.0
    %142 = vadd.xlane.f32.xlu0 %v141
    %v143 = vpop.xlane.xlu0 %142
    %v144 = vsel %vm89, %v43, 0.0
    %145 = vadd.xlane.f32.xlu0 %v144
    %v146 = vpop.xlane.xlu0 %145
    %v147 = vsel %vm89, %v44, 0.0
    %148 = vadd.xlane.f32.xlu0 %v147
    %v149 = vpop.xlane.xlu0 %148
    %v150 = vsel %vm89, %v45, 0.0
    %151 = vadd.xlane.f32.xlu0 %v150
    %v152 = vpop.xlane.xlu0 %151
    %v153 = vsel %vm89, %v46, 0.0
    %154 = vadd.xlane.f32.xlu0 %v153
    %v155 = vpop.xlane.xlu0 %154
    %v156 = vsel %vm89, %v47, 0.0
    %157 = vadd.xlane.f32.xlu0 %v156
    %v158 = vpop.xlane.xlu0 %157
    %v159 = vsel %vm89, %v48, 0.0
    %160 = vadd.xlane.f32.xlu0 %v159
    %v161 = vpop.xlane.xlu0 %160
    %v162 = vsel %vm89, %v49, 0.0
    %163 = vadd.xlane.f32.xlu0 %v162
    %v164 = vpop.xlane.xlu0 %163
    %v165 = vsel %vm89, %v50, 0.0
    %166 = vadd.xlane.f32.xlu0 %v165
    %v167 = vpop.xlane.xlu0 %166
    %v168 = vsel %vm89, %v51, 0.0
    %169 = vadd.xlane.f32.xlu0 %v168
    %v170 = vpop.xlane.xlu0 %169
    %v171 = vsel %vm89, %v52, 0.0
    %172 = vadd.xlane.f32.xlu0 %v171
    %v173 = vpop.xlane.xlu0 %172
    %v174 = vsel %vm89, %v53, 0.0
    %175 = vadd.xlane.f32.xlu0 %v174
    %v176 = vpop.xlane.xlu0 %175
    %v177 = vsel %vm89, %v54, 0.0
    %178 = vadd.xlane.f32.xlu0 %v177
    %v179 = vpop.xlane.xlu0 %178
    %v180 = vsel %vm89, %v55, 0.0
    %181 = vadd.xlane.f32.xlu0 %v180
    %v182 = vpop.xlane.xlu0 %181
    %v183 = vsel %vm89, %v56, 0.0
    %184 = vadd.xlane.f32.xlu0 %v183
    %v185 = vpop.xlane.xlu0 %184
    %v186 = vsel %vm89, %v57, 0.0
    %187 = vadd.xlane.f32.xlu0 %v186
    %v188 = vpop.xlane.xlu0 %187
    %v189 = vsel %vm89, %v58, 0.0
    %190 = vadd.xlane.f32.xlu0 %v189
    %v191 = vpop.xlane.xlu0 %190
    %v192 = vsel %vm89, %v59, 0.0
    %193 = vadd.xlane.f32.xlu0 %v192
    %v194 = vpop.xlane.xlu0 %193
    %v195 = vsel %vm89, %v60, 0.0
    %196 = vadd.xlane.f32.xlu0 %v195
    %v197 = vpop.xlane.xlu0 %196
    %v198 = vsel %vm89, %v61, 0.0
    %199 = vadd.xlane.f32.xlu0 %v198
    %v200 = vpop.xlane.xlu0 %199
    %v201 = vsel %vm89, %v62, 0.0
    %202 = vadd.xlane.f32.xlu0 %v201
    %v203 = vpop.xlane.xlu0 %202
    %v204 = vsel %vm89, %v63, 0.0
    %205 = vadd.xlane.f32.xlu0 %v204
    %v206 = vpop.xlane.xlu0 %205
    %v207 = vsel %vm89, %v64, 0.0
    %208 = vadd.xlane.f32.xlu0 %v207
    %v209 = vpop.xlane.xlu0 %208
    %v210 = vsel %vm89, %v65, 0.0
    %211 = vadd.xlane.f32.xlu0 %v210
    %v212 = vpop.xlane.xlu0 %211
    %v213 = vsel %vm89, %v66, 0.0
    %214 = vadd.xlane.f32.xlu0 %v213
    %v215 = vpop.xlane.xlu0 %214
    %v216 = vsel %vm89, %v67, 0.0
    %217 = vadd.xlane.f32.xlu0 %v216
    %v218 = vpop.xlane.xlu0 %217
    %v219 = vsel %vm89, %v68, 0.0
    %220 = vadd.xlane.f32.xlu0 %v219
    %v221 = vpop.xlane.xlu0 %220
    %v222 = vsel %vm89, %v69, 0.0
    %223 = vadd.xlane.f32.xlu0 %v222
    %v224 = vpop.xlane.xlu0 %223
    %v225 = vsel %vm89, %v70, 0.0
    %226 = vadd.xlane.f32.xlu0 %v225
    %v227 = vpop.xlane.xlu0 %226
    %v228 = vsel %vm89, %v71, 0.0
    %229 = vadd.xlane.f32.xlu0 %v228
    %v230 = vpop.xlane.xlu0 %229
    %v231 = vsel %vm89, %v72, 0.0
    %232 = vadd.xlane.f32.xlu0 %v231
    %v233 = vpop.xlane.xlu0 %232
    %v234 = vsel %vm89, %v73, 0.0
    %235 = vadd.xlane.f32.xlu0 %v234
    %v236 = vpop.xlane.xlu0 %235
    %v237 = vsel %vm89, %v74, 0.0
    %238 = vadd.xlane.f32.xlu0 %v237
    %v239 = vpop.xlane.xlu0 %238
    %v240 = vsel %vm89, %v75, 0.0
    %241 = vadd.xlane.f32.xlu0 %v240
    %v242 = vpop.xlane.xlu0 %241
    %v243 = vsel %vm89, %v76, 0.0
    %244 = vadd.xlane.f32.xlu0 %v243
    %v245 = vpop.xlane.xlu0 %244
    %v246 = vsel %vm89, %v77, 0.0
    %247 = vadd.xlane.f32.xlu0 %v246
    %v248 = vpop.xlane.xlu0 %247
    %v249 = vsel %vm89, %v78, 0.0
    %250 = vadd.xlane.f32.xlu0 %v249
    %v251 = vpop.xlane.xlu0 %250
    %v252 = vsel %vm89, %v79, 0.0
    %253 = vadd.xlane.f32.xlu0 %v252
    %v254 = vpop.xlane.xlu0 %253
    %v255 = vsel %vm89, %v80, 0.0
    %256 = vadd.xlane.f32.xlu0 %v255
    %v257 = vpop.xlane.xlu0 %256
    %v258 = vsel %vm89, %v81, 0.0
    %259 = vadd.xlane.f32.xlu0 %v258
    %v260 = vpop.xlane.xlu0 %259
    %v261 = vsel %vm89, %v82, 0.0
    %262 = vadd.xlane.f32.xlu0 %v261
    %v263 = vpop.xlane.xlu0 %262
    %v264 = vsel %vm89, %v83, 0.0
    %265 = vadd.xlane.f32.xlu0 %v264
    %v266 = vpop.xlane.xlu0 %265
    %v267 = vsel %vm89, %v84, 0.0
    %268 = vadd.xlane.f32.xlu0 %v267
    %v269 = vpop.xlane.xlu0 %268
    %v270 = vsel %vm89, %v85, 0.0
    %271 = vadd.xlane.f32.xlu0 %v270
    %v272 = vpop.xlane.xlu0 %271
    %v273 = vsel %vm89, %v86, 0.0
    %274 = vadd.xlane.f32.xlu0 %v273
    %v275 = vpop.xlane.xlu0 %274
    %v276 = vsel %vm89, %v87, 0.0
    %277 = vadd.xlane.f32.xlu0 %v276
    %v278 = vpop.xlane.xlu0 %277
    %v279 = vsel %vm89, %v88, 0.0
    %280 = vadd.xlane.f32.xlu0 %v279
    %v281 = vpop.xlane.xlu0 %280
    %v282 = vrcp.pop 32.0
    %v283 = vmul.f32 %v92, %v282
    %v284 = vmul.f32 %v95, %v282
    %v285 = vmul.f32 %v98, %v282
    %v286 = vmul.f32 %v101, %v282
    %v287 = vmul.f32 %v104, %v282
    %v288 = vmul.f32 %v107, %v282
    %v289 = vmul.f32 %v110, %v282
    %v290 = vmul.f32 %v113, %v282
    %v291 = vmul.f32 %v116, %v282
    %v292 = vmul.f32 %v119, %v282
    %v293 = vmul.f32 %v122, %v282
    %v294 = vmul.f32 %v125, %v282
    %v295 = vmul.f32 %v128, %v282
    %v296 = vmul.f32 %v131, %v282
    %v297 = vmul.f32 %v134, %v282
    %v298 = vmul.f32 %v137, %v282
    %v299 = vmul.f32 %v140, %v282
    %v300 = vmul.f32 %v143, %v282
    %v301 = vmul.f32 %v146, %v282
    %v302 = vmul.f32 %v149, %v282
    %v303 = vmul.f32 %v152, %v282
    %v304 = vmul.f32 %v155, %v282
    %v305 = vmul.f32 %v158, %v282
    %v306 = vmul.f32 %v161, %v282
    %v307 = vmul.f32 %v164, %v282
    %v308 = vmul.f32 %v167, %v282
    %v309 = vmul.f32 %v170, %v282
    %v310 = vmul.f32 %v173, %v282
    %v311 = vmul.f32 %v176, %v282
    %v312 = vmul.f32 %v179, %v282
    %v313 = vmul.f32 %v182, %v282
    %v314 = vmul.f32 %v185, %v282
    %v315 = vmul.f32 %v188, %v282
    %v316 = vmul.f32 %v191, %v282
    %v317 = vmul.f32 %v194, %v282
    %v318 = vmul.f32 %v197, %v282
    %v319 = vmul.f32 %v200, %v282
    %v320 = vmul.f32 %v203, %v282
    %v321 = vmul.f32 %v206, %v282
    %v322 = vmul.f32 %v209, %v282
    %v323 = vmul.f32 %v212, %v282
    %v324 = vmul.f32 %v215, %v282
    %v325 = vmul.f32 %v218, %v282
    %v326 = vmul.f32 %v221, %v282
    %v327 = vmul.f32 %v224, %v282
    %v328 = vmul.f32 %v227, %v282
    %v329 = vmul.f32 %v230, %v282
    %v330 = vmul.f32 %v233, %v282
    %v331 = vmul.f32 %v236, %v282
    %v332 = vmul.f32 %v239, %v282
    %v333 = vmul.f32 %v242, %v282
    %v334 = vmul.f32 %v245, %v282
    %v335 = vmul.f32 %v248, %v282
    %v336 = vmul.f32 %v251, %v282
    %v337 = vmul.f32 %v254, %v282
    %v338 = vmul.f32 %v257, %v282
    %v339 = vmul.f32 %v260, %v282
    %v340 = vmul.f32 %v263, %v282
    %v341 = vmul.f32 %v266, %v282
    %v342 = vmul.f32 %v269, %v282
    %v343 = vmul.f32 %v272, %v282
    %v344 = vmul.f32 %v275, %v282
    %v345 = vmul.f32 %v278, %v282
    %v346 = vmul.f32 %v281, %v282
    %v347 = vsub.f32 %v25, %v283
    %v348 = vsub.f32 %v26, %v284
    %v349 = vsub.f32 %v27, %v285
    %v350 = vsub.f32 %v28, %v286
    %v351 = vsub.f32 %v29, %v287
    %v352 = vsub.f32 %v30, %v288
    %v353 = vsub.f32 %v31, %v289
    %v354 = vsub.f32 %v32, %v290
    %v355 = vsub.f32 %v33, %v291
    %v356 = vsub.f32 %v34, %v292
    %v357 = vsub.f32 %v35, %v293
    %v358 = vsub.f32 %v36, %v294
    %v359 = vsub.f32 %v37, %v295
    %v360 = vsub.f32 %v38, %v296
    %v361 = vsub.f32 %v39, %v297
    %v362 = vsub.f32 %v40, %v298
    %v363 = vsub.f32 %v41, %v299
    %v364 = vsub.f32 %v42, %v300
    %v365 = vsub.f32 %v43, %v301
    %v366 = vsub.f32 %v44, %v302
    %v367 = vsub.f32 %v45, %v303
    %v368 = vsub.f32 %v46, %v304
    %v369 = vsub.f32 %v47, %v305
    %v370 = vsub.f32 %v48, %v306
    %v371 = vsub.f32 %v49, %v307
    %v372 = vsub.f32 %v50, %v308
    %v373 = vsub.f32 %v51, %v309
    %v374 = vsub.f32 %v52, %v310
    %v375 = vsub.f32 %v53, %v311
    %v376 = vsub.f32 %v54, %v312
    %v377 = vsub.f32 %v55, %v313
    %v378 = vsub.f32 %v56, %v314
    %v379 = vsub.f32 %v57, %v315
    %v380 = vsub.f32 %v58, %v316
    %v381 = vsub.f32 %v59, %v317
    %v382 = vsub.f32 %v60, %v318
    %v383 = vsub.f32 %v61, %v319
    %v384 = vsub.f32 %v62, %v320
    %v385 = vsub.f32 %v63, %v321
    %v386 = vsub.f32 %v64, %v322
    %v387 = vsub.f32 %v65, %v323
    %v388 = vsub.f32 %v66, %v324
    %v389 = vsub.f32 %v67, %v325
    %v390 = vsub.f32 %v68, %v326
    %v391 = vsub.f32 %v69, %v327
    %v392 = vsub.f32 %v70, %v328
    %v393 = vsub.f32 %v71, %v329
    %v394 = vsub.f32 %v72, %v330
    %v395 = vsub.f32 %v73, %v331
    %v396 = vsub.f32 %v74, %v332
    %v397 = vsub.f32 %v75, %v333
    %v398 = vsub.f32 %v76, %v334
    %v399 = vsub.f32 %v77, %v335
    %v400 = vsub.f32 %v78, %v336
    %v401 = vsub.f32 %v79, %v337
    %v402 = vsub.f32 %v80, %v338
    %v403 = vsub.f32 %v81, %v339
    %v404 = vsub.f32 %v82, %v340
    %v405 = vsub.f32 %v83, %v341
    %v406 = vsub.f32 %v84, %v342
    %v407 = vsub.f32 %v85, %v343
    %v408 = vsub.f32 %v86, %v344
    %v409 = vsub.f32 %v87, %v345
    %v410 = vsub.f32 %v88, %v346
    %v411 = vmul.f32 %v347, %v347
    %v412 = vmul.f32 %v348, %v348
    %v413 = vmul.f32 %v349, %v349
    %v414 = vmul.f32 %v350, %v350
    %v415 = vmul.f32 %v351, %v351
    %v416 = vmul.f32 %v352, %v352
    %v417 = vmul.f32 %v353, %v353
    %v418 = vmul.f32 %v354, %v354
    %v419 = vmul.f32 %v355, %v355
    %v420 = vmul.f32 %v356, %v356
    %v421 = vmul.f32 %v357, %v357
    %v422 = vmul.f32 %v358, %v358
    %v423 = vmul.f32 %v359, %v359
    %v424 = vmul.f32 %v360, %v360
    %v425 = vmul.f32 %v361, %v361
    %v426 = vmul.f32 %v362, %v362
    %v427 = vmul.f32 %v363, %v363
    %v428 = vmul.f32 %v364, %v364
    %v429 = vmul.f32 %v365, %v365
    %v430 = vmul.f32 %v366, %v366
    %v431 = vmul.f32 %v367, %v367
    %v432 = vmul.f32 %v368, %v368
    %v433 = vmul.f32 %v369, %v369
    %v434 = vmul.f32 %v370, %v370
    %v435 = vmul.f32 %v371, %v371
    %v436 = vmul.f32 %v372, %v372
    %v437 = vmul.f32 %v373, %v373
    %v438 = vmul.f32 %v374, %v374
    %v439 = vmul.f32 %v375, %v375
    %v440 = vmul.f32 %v376, %v376
    %v441 = vmul.f32 %v377, %v377
    %v442 = vmul.f32 %v378, %v378
    %v443 = vmul.f32 %v379, %v379
    %v444 = vmul.f32 %v380, %v380
    %v445 = vmul.f32 %v381, %v381
    %v446 = vmul.f32 %v382, %v382
    %v447 = vmul.f32 %v383, %v383
    %v448 = vmul.f32 %v384, %v384
    %v449 = vmul.f32 %v385, %v385
    %v450 = vmul.f32 %v386, %v386
    %v451 = vmul.f32 %v387, %v387
    %v452 = vmul.f32 %v388, %v388
    %v453 = vmul.f32 %v389, %v389
    %v454 = vmul.f32 %v390, %v390
    %v455 = vmul.f32 %v391, %v391
    %v456 = vmul.f32 %v392, %v392
    %v457 = vmul.f32 %v393, %v393
    %v458 = vmul.f32 %v394, %v394
    %v459 = vmul.f32 %v395, %v395
    %v460 = vmul.f32 %v396, %v396
    %v461 = vmul.f32 %v397, %v397
    %v462 = vmul.f32 %v398, %v398
    %v463 = vmul.f32 %v399, %v399
    %v464 = vmul.f32 %v400, %v400
    %v465 = vmul.f32 %v401, %v401
    %v466 = vmul.f32 %v402, %v402
    %v467 = vmul.f32 %v403, %v403
    %v468 = vmul.f32 %v404, %v404
    %v469 = vmul.f32 %v405, %v405
    %v470 = vmul.f32 %v406, %v406
    %v471 = vmul.f32 %v407, %v407
    %v472 = vmul.f32 %v408, %v408
    %v473 = vmul.f32 %v409, %v409
    %v474 = vmul.f32 %v410, %v410
    %v475 = vsel %vm89, %v411, 0.0
    %476 = vadd.xlane.f32.xlu0 %v475
    %v477 = vpop.xlane.xlu0 %476
    %v478 = vsel %vm89, %v412, 0.0
    %479 = vadd.xlane.f32.xlu0 %v478
    %v480 = vpop.xlane.xlu0 %479
    %v481 = vsel %vm89, %v413, 0.0
    %482 = vadd.xlane.f32.xlu0 %v481
    %v483 = vpop.xlane.xlu0 %482
    %v484 = vsel %vm89, %v414, 0.0
    %485 = vadd.xlane.f32.xlu0 %v484
    %v486 = vpop.xlane.xlu0 %485
    %v487 = vsel %vm89, %v415, 0.0
    %488 = vadd.xlane.f32.xlu0 %v487
    %v489 = vpop.xlane.xlu0 %488
    %v490 = vsel %vm89, %v416, 0.0
    %491 = vadd.xlane.f32.xlu0 %v490
    %v492 = vpop.xlane.xlu0 %491
    %v493 = vsel %vm89, %v417, 0.0
    %494 = vadd.xlane.f32.xlu0 %v493
    %v495 = vpop.xlane.xlu0 %494
    %v496 = vsel %vm89, %v418, 0.0
    %497 = vadd.xlane.f32.xlu0 %v496
    %v498 = vpop.xlane.xlu0 %497
    %v499 = vsel %vm89, %v419, 0.0
    %500 = vadd.xlane.f32.xlu0 %v499
    %v501 = vpop.xlane.xlu0 %500
    %v502 = vsel %vm89, %v420, 0.0
    %503 = vadd.xlane.f32.xlu0 %v502
    %v504 = vpop.xlane.xlu0 %503
    %v505 = vsel %vm89, %v421, 0.0
    %506 = vadd.xlane.f32.xlu0 %v505
    %v507 = vpop.xlane.xlu0 %506
    %v508 = vsel %vm89, %v422, 0.0
    %509 = vadd.xlane.f32.xlu0 %v508
    %v510 = vpop.xlane.xlu0 %509
    %v511 = vsel %vm89, %v423, 0.0
    %512 = vadd.xlane.f32.xlu0 %v511
    %v513 = vpop.xlane.xlu0 %512
    %v514 = vsel %vm89, %v424, 0.0
    %515 = vadd.xlane.f32.xlu0 %v514
    %v516 = vpop.xlane.xlu0 %515
    %v517 = vsel %vm89, %v425, 0.0
    %518 = vadd.xlane.f32.xlu0 %v517
    %v519 = vpop.xlane.xlu0 %518
    %v520 = vsel %vm89, %v426, 0.0
    %521 = vadd.xlane.f32.xlu0 %v520
    %v522 = vpop.xlane.xlu0 %521
    %v523 = vsel %vm89, %v427, 0.0
    %524 = vadd.xlane.f32.xlu0 %v523
    %v525 = vpop.xlane.xlu0 %524
    %v526 = vsel %vm89, %v428, 0.0
    %527 = vadd.xlane.f32.xlu0 %v526
    %v528 = vpop.xlane.xlu0 %527
    %v529 = vsel %vm89, %v429, 0.0
    %530 = vadd.xlane.f32.xlu0 %v529
    %v531 = vpop.xlane.xlu0 %530
    %v532 = vsel %vm89, %v430, 0.0
    %533 = vadd.xlane.f32.xlu0 %v532
    %v534 = vpop.xlane.xlu0 %533
    %v535 = vsel %vm89, %v431, 0.0
    %536 = vadd.xlane.f32.xlu0 %v535
    %v537 = vpop.xlane.xlu0 %536
    %v538 = vsel %vm89, %v432, 0.0
    %539 = vadd.xlane.f32.xlu0 %v538
    %v540 = vpop.xlane.xlu0 %539
    %v541 = vsel %vm89, %v433, 0.0
    %542 = vadd.xlane.f32.xlu0 %v541
    %v543 = vpop.xlane.xlu0 %542
    %v544 = vsel %vm89, %v434, 0.0
    %545 = vadd.xlane.f32.xlu0 %v544
    %v546 = vpop.xlane.xlu0 %545
    %v547 = vsel %vm89, %v435, 0.0
    %548 = vadd.xlane.f32.xlu0 %v547
    %v549 = vpop.xlane.xlu0 %548
    %v550 = vsel %vm89, %v436, 0.0
    %551 = vadd.xlane.f32.xlu0 %v550
    %v552 = vpop.xlane.xlu0 %551
    %v553 = vsel %vm89, %v437, 0.0
    %554 = vadd.xlane.f32.xlu0 %v553
    %v555 = vpop.xlane.xlu0 %554
    %v556 = vsel %vm89, %v438, 0.0
    %557 = vadd.xlane.f32.xlu0 %v556
    %v558 = vpop.xlane.xlu0 %557
    %v559 = vsel %vm89, %v439, 0.0
    %560 = vadd.xlane.f32.xlu0 %v559
    %v561 = vpop.xlane.xlu0 %560
    %v562 = vsel %vm89, %v440, 0.0
    %563 = vadd.xlane.f32.xlu0 %v562
    %v564 = vpop.xlane.xlu0 %563
    %v565 = vsel %vm89, %v441, 0.0
    %566 = vadd.xlane.f32.xlu0 %v565
    %v567 = vpop.xlane.xlu0 %566
    %v568 = vsel %vm89, %v442, 0.0
    %569 = vadd.xlane.f32.xlu0 %v568
    %v570 = vpop.xlane.xlu0 %569
    %v571 = vsel %vm89, %v443, 0.0
    %572 = vadd.xlane.f32.xlu0 %v571
    %v573 = vpop.xlane.xlu0 %572
    %v574 = vsel %vm89, %v444, 0.0
    %575 = vadd.xlane.f32.xlu0 %v574
    %v576 = vpop.xlane.xlu0 %575
    %v577 = vsel %vm89, %v445, 0.0
    %578 = vadd.xlane.f32.xlu0 %v577
    %v579 = vpop.xlane.xlu0 %578
    %v580 = vsel %vm89, %v446, 0.0
    %581 = vadd.xlane.f32.xlu0 %v580
    %v582 = vpop.xlane.xlu0 %581
    %v583 = vsel %vm89, %v447, 0.0
    %584 = vadd.xlane.f32.xlu0 %v583
    %v585 = vpop.xlane.xlu0 %584
    %v586 = vsel %vm89, %v448, 0.0
    %587 = vadd.xlane.f32.xlu0 %v586
    %v588 = vpop.xlane.xlu0 %587
    %v589 = vsel %vm89, %v449, 0.0
    %590 = vadd.xlane.f32.xlu0 %v589
    %v591 = vpop.xlane.xlu0 %590
    %v592 = vsel %vm89, %v450, 0.0
    %593 = vadd.xlane.f32.xlu0 %v592
    %v594 = vpop.xlane.xlu0 %593
    %v595 = vsel %vm89, %v451, 0.0
    %596 = vadd.xlane.f32.xlu0 %v595
    %v597 = vpop.xlane.xlu0 %596
    %v598 = vsel %vm89, %v452, 0.0
    %599 = vadd.xlane.f32.xlu0 %v598
    %v600 = vpop.xlane.xlu0 %599
    %v601 = vsel %vm89, %v453, 0.0
    %602 = vadd.xlane.f32.xlu0 %v601
    %v603 = vpop.xlane.xlu0 %602
    %v604 = vsel %vm89, %v454, 0.0
    %605 = vadd.xlane.f32.xlu0 %v604
    %v606 = vpop.xlane.xlu0 %605
    %v607 = vsel %vm89, %v455, 0.0
    %608 = vadd.xlane.f32.xlu0 %v607
    %v609 = vpop.xlane.xlu0 %608
    %v610 = vsel %vm89, %v456, 0.0
    %611 = vadd.xlane.f32.xlu0 %v610
    %v612 = vpop.xlane.xlu0 %611
    %v613 = vsel %vm89, %v457, 0.0
    %614 = vadd.xlane.f32.xlu0 %v613
    %v615 = vpop.xlane.xlu0 %614
    %v616 = vsel %vm89, %v458, 0.0
    %617 = vadd.xlane.f32.xlu0 %v616
    %v618 = vpop.xlane.xlu0 %617
    %v619 = vsel %vm89, %v459, 0.0
    %620 = vadd.xlane.f32.xlu0 %v619
    %v621 = vpop.xlane.xlu0 %620
    %v622 = vsel %vm89, %v460, 0.0
    %623 = vadd.xlane.f32.xlu0 %v622
    %v624 = vpop.xlane.xlu0 %623
    %v625 = vsel %vm89, %v461, 0.0
    %626 = vadd.xlane.f32.xlu0 %v625
    %v627 = vpop.xlane.xlu0 %626
    %v628 = vsel %vm89, %v462, 0.0
    %629 = vadd.xlane.f32.xlu0 %v628
    %v630 = vpop.xlane.xlu0 %629
    %v631 = vsel %vm89, %v463, 0.0
    %632 = vadd.xlane.f32.xlu0 %v631
    %v633 = vpop.xlane.xlu0 %632
    %v634 = vsel %vm89, %v464, 0.0
    %635 = vadd.xlane.f32.xlu0 %v634
    %v636 = vpop.xlane.xlu0 %635
    %v637 = vsel %vm89, %v465, 0.0
    %638 = vadd.xlane.f32.xlu0 %v637
    %v639 = vpop.xlane.xlu0 %638
    %v640 = vsel %vm89, %v466, 0.0
    %641 = vadd.xlane.f32.xlu0 %v640
    %v642 = vpop.xlane.xlu0 %641
    %v643 = vsel %vm89, %v467, 0.0
    %644 = vadd.xlane.f32.xlu0 %v643
    %v645 = vpop.xlane.xlu0 %644
    %v646 = vsel %vm89, %v468, 0.0
    %647 = vadd.xlane.f32.xlu0 %v646
    %v648 = vpop.xlane.xlu0 %647
    %v649 = vsel %vm89, %v469, 0.0
    %650 = vadd.xlane.f32.xlu0 %v649
    %v651 = vpop.xlane.xlu0 %650
    %v652 = vsel %vm89, %v470, 0.0
    %653 = vadd.xlane.f32.xlu0 %v652
    %v654 = vpop.xlane.xlu0 %653
    %v655 = vsel %vm89, %v471, 0.0
    %656 = vadd.xlane.f32.xlu0 %v655
    %v657 = vpop.xlane.xlu0 %656
    %v658 = vsel %vm89, %v472, 0.0
    %659 = vadd.xlane.f32.xlu0 %v658
    %v660 = vpop.xlane.xlu0 %659
    %v661 = vsel %vm89, %v473, 0.0
    %662 = vadd.xlane.f32.xlu0 %v661
    %v663 = vpop.xlane.xlu0 %662
    %v664 = vsel %vm89, %v474, 0.0
    %665 = vadd.xlane.f32.xlu0 %v664
    %v666 = vpop.xlane.xlu0 %665
    %v667 = vmul.f32 %v477, %v282
    %v668 = vmul.f32 %v480, %v282
    %v669 = vmul.f32 %v483, %v282
    %v670 = vmul.f32 %v486, %v282
    %v671 = vmul.f32 %v489, %v282
    %v672 = vmul.f32 %v492, %v282
    %v673 = vmul.f32 %v495, %v282
    %v674 = vmul.f32 %v498, %v282
    %v675 = vmul.f32 %v501, %v282
    %v676 = vmul.f32 %v504, %v282
    %v677 = vmul.f32 %v507, %v282
    %v678 = vmul.f32 %v510, %v282
    %v679 = vmul.f32 %v513, %v282
    %v680 = vmul.f32 %v516, %v282
    %v681 = vmul.f32 %v519, %v282
    %v682 = vmul.f32 %v522, %v282
    %v683 = vmul.f32 %v525, %v282
    %v684 = vmul.f32 %v528, %v282
    %v685 = vmul.f32 %v531, %v282
    %v686 = vmul.f32 %v534, %v282
    %v687 = vmul.f32 %v537, %v282
    %v688 = vmul.f32 %v540, %v282
    %v689 = vmul.f32 %v543, %v282
    %v690 = vmul.f32 %v546, %v282
    %v691 = vmul.f32 %v549, %v282
    %v692 = vmul.f32 %v552, %v282
    %v693 = vmul.f32 %v555, %v282
    %v694 = vmul.f32 %v558, %v282
    %v695 = vmul.f32 %v561, %v282
    %v696 = vmul.f32 %v564, %v282
    %v697 = vmul.f32 %v567, %v282
    %v698 = vmul.f32 %v570, %v282
    %v699 = vmul.f32 %v573, %v282
    %v700 = vmul.f32 %v576, %v282
    %v701 = vmul.f32 %v579, %v282
    %v702 = vmul.f32 %v582, %v282
    %v703 = vmul.f32 %v585, %v282
    %v704 = vmul.f32 %v588, %v282
    %v705 = vmul.f32 %v591, %v282
    %v706 = vmul.f32 %v594, %v282
    %v707 = vmul.f32 %v597, %v282
    %v708 = vmul.f32 %v600, %v282
    %v709 = vmul.f32 %v603, %v282
    %v710 = vmul.f32 %v606, %v282
    %v711 = vmul.f32 %v609, %v282
    %v712 = vmul.f32 %v612, %v282
    %v713 = vmul.f32 %v615, %v282
    %v714 = vmul.f32 %v618, %v282
    %v715 = vmul.f32 %v621, %v282
    %v716 = vmul.f32 %v624, %v282
    %v717 = vmul.f32 %v627, %v282
    %v718 = vmul.f32 %v630, %v282
    %v719 = vmul.f32 %v633, %v282
    %v720 = vmul.f32 %v636, %v282
    %v721 = vmul.f32 %v639, %v282
    %v722 = vmul.f32 %v642, %v282
    %v723 = vmul.f32 %v645, %v282
    %v724 = vmul.f32 %v648, %v282
    %v725 = vmul.f32 %v651, %v282
    %v726 = vmul.f32 %v654, %v282
    %v727 = vmul.f32 %v657, %v282
    %v728 = vmul.f32 %v660, %v282
    %v729 = vmul.f32 %v663, %v282
    %v730 = vmul.f32 %v666, %v282
    %v731 = vadd.f32 %v667, 1e-05
    %v732 = vadd.f32 %v668, 1e-05
    %v733 = vadd.f32 %v669, 1e-05
    %v734 = vadd.f32 %v670, 1e-05
    %v735 = vadd.f32 %v671, 1e-05
    %v736 = vadd.f32 %v672, 1e-05
    %v737 = vadd.f32 %v673, 1e-05
    %v738 = vadd.f32 %v674, 1e-05
    %v739 = vadd.f32 %v675, 1e-05
    %v740 = vadd.f32 %v676, 1e-05
    %v741 = vadd.f32 %v677, 1e-05
    %v742 = vadd.f32 %v678, 1e-05
    %v743 = vadd.f32 %v679, 1e-05
    %v744 = vadd.f32 %v680, 1e-05
    %v745 = vadd.f32 %v681, 1e-05
    %v746 = vadd.f32 %v682, 1e-05
    %v747 = vadd.f32 %v683, 1e-05
    %v748 = vadd.f32 %v684, 1e-05
    %v749 = vadd.f32 %v685, 1e-05
    %v750 = vadd.f32 %v686, 1e-05
    %v751 = vadd.f32 %v687, 1e-05
    %v752 = vadd.f32 %v688, 1e-05
    %v753 = vadd.f32 %v689, 1e-05
    %v754 = vadd.f32 %v690, 1e-05
    %v755 = vadd.f32 %v691, 1e-05
    %v756 = vadd.f32 %v692, 1e-05
    %v757 = vadd.f32 %v693, 1e-05
    %v758 = vadd.f32 %v694, 1e-05
    %v759 = vadd.f32 %v695, 1e-05
    %v760 = vadd.f32 %v696, 1e-05
    %v761 = vadd.f32 %v697, 1e-05
    %v762 = vadd.f32 %v698, 1e-05
    %v763 = vadd.f32 %v699, 1e-05
    %v764 = vadd.f32 %v700, 1e-05
    %v765 = vadd.f32 %v701, 1e-05
    %v766 = vadd.f32 %v702, 1e-05
    %v767 = vadd.f32 %v703, 1e-05
    %v768 = vadd.f32 %v704, 1e-05
    %v769 = vadd.f32 %v705, 1e-05
    %v770 = vadd.f32 %v706, 1e-05
    %v771 = vadd.f32 %v707, 1e-05
    %v772 = vadd.f32 %v708, 1e-05
    %v773 = vadd.f32 %v709, 1e-05
    %v774 = vadd.f32 %v710, 1e-05
    %v775 = vadd.f32 %v711, 1e-05
    %v776 = vadd.f32 %v712, 1e-05
    %v777 = vadd.f32 %v713, 1e-05
    %v778 = vadd.f32 %v714, 1e-05
    %v779 = vadd.f32 %v715, 1e-05
    %v780 = vadd.f32 %v716, 1e-05
    %v781 = vadd.f32 %v717, 1e-05
    %v782 = vadd.f32 %v718, 1e-05
    %v783 = vadd.f32 %v719, 1e-05
    %v784 = vadd.f32 %v720, 1e-05
    %v785 = vadd.f32 %v721, 1e-05
    %v786 = vadd.f32 %v722, 1e-05
    %v787 = vadd.f32 %v723, 1e-05
    %v788 = vadd.f32 %v724, 1e-05
    %v789 = vadd.f32 %v725, 1e-05
    %v790 = vadd.f32 %v726, 1e-05
    %v791 = vadd.f32 %v727, 1e-05
    %v792 = vadd.f32 %v728, 1e-05
    %v793 = vadd.f32 %v729, 1e-05
    %v794 = vadd.f32 %v730, 1e-05
    %v795 = vrsqrt.pop %v731
    %v796 = vrsqrt.pop %v732
    %v797 = vrsqrt.pop %v733
    %v798 = vrsqrt.pop %v734
    %v799 = vrsqrt.pop %v735
    %v800 = vrsqrt.pop %v736
    %v801 = vrsqrt.pop %v737
    %v802 = vrsqrt.pop %v738
    %v803 = vrsqrt.pop %v739
    %v804 = vrsqrt.pop %v740
    %v805 = vrsqrt.pop %v741
    %v806 = vrsqrt.pop %v742
    %v807 = vrsqrt.pop %v743
    %v808 = vrsqrt.pop %v744
    %v809 = vrsqrt.pop %v745
    %v810 = vrsqrt.pop %v746
    %v811 = vrsqrt.pop %v747
    %v812 = vrsqrt.pop %v748
    %v813 = vrsqrt.pop %v749
    %v814 = vrsqrt.pop %v750
    %v815 = vrsqrt.pop %v751
    %v816 = vrsqrt.pop %v752
    %v817 = vrsqrt.pop %v753
    %v818 = vrsqrt.pop %v754
    %v819 = vrsqrt.pop %v755
    %v820 = vrsqrt.pop %v756
    %v821 = vrsqrt.pop %v757
    %v822 = vrsqrt.pop %v758
    %v823 = vrsqrt.pop %v759
    %v824 = vrsqrt.pop %v760
    %v825 = vrsqrt.pop %v761
    %v826 = vrsqrt.pop %v762
    %v827 = vrsqrt.pop %v763
    %v828 = vrsqrt.pop %v764
    %v829 = vrsqrt.pop %v765
    %v830 = vrsqrt.pop %v766
    %v831 = vrsqrt.pop %v767
    %v832 = vrsqrt.pop %v768
    %v833 = vrsqrt.pop %v769
    %v834 = vrsqrt.pop %v770
    %v835 = vrsqrt.pop %v771
    %v836 = vrsqrt.pop %v772
    %v837 = vrsqrt.pop %v773
    %v838 = vrsqrt.pop %v774
    %v839 = vrsqrt.pop %v775
    %v840 = vrsqrt.pop %v776
    %v841 = vrsqrt.pop %v777
    %v842 = vrsqrt.pop %v778
    %v843 = vrsqrt.pop %v779
    %v844 = vrsqrt.pop %v780
    %v845 = vrsqrt.pop %v781
    %v846 = vrsqrt.pop %v782
    %v847 = vrsqrt.pop %v783
    %v848 = vrsqrt.pop %v784
    %v849 = vrsqrt.pop %v785
    %v850 = vrsqrt.pop %v786
    %v851 = vrsqrt.pop %v787
    %v852 = vrsqrt.pop %v788
    %v853 = vrsqrt.pop %v789
    %v854 = vrsqrt.pop %v790
    %v855 = vrsqrt.pop %v791
    %v856 = vrsqrt.pop %v792
    %v857 = vrsqrt.pop %v793
    %v858 = vrsqrt.pop %v794
    %v859 = vmul.f32 %v347, %v795
    %v860 = vmul.f32 %v348, %v796
    %v861 = vmul.f32 %v349, %v797
    %v862 = vmul.f32 %v350, %v798
    %v863 = vmul.f32 %v351, %v799
    %v864 = vmul.f32 %v352, %v800
    %v865 = vmul.f32 %v353, %v801
    %v866 = vmul.f32 %v354, %v802
    %v867 = vmul.f32 %v355, %v803
    %v868 = vmul.f32 %v356, %v804
    %v869 = vmul.f32 %v357, %v805
    %v870 = vmul.f32 %v358, %v806
    %v871 = vmul.f32 %v359, %v807
    %v872 = vmul.f32 %v360, %v808
    %v873 = vmul.f32 %v361, %v809
    %v874 = vmul.f32 %v362, %v810
    %v875 = vmul.f32 %v363, %v811
    %v876 = vmul.f32 %v364, %v812
    %v877 = vmul.f32 %v365, %v813
    %v878 = vmul.f32 %v366, %v814
    %v879 = vmul.f32 %v367, %v815
    %v880 = vmul.f32 %v368, %v816
    %v881 = vmul.f32 %v369, %v817
    %v882 = vmul.f32 %v370, %v818
    %v883 = vmul.f32 %v371, %v819
    %v884 = vmul.f32 %v372, %v820
    %v885 = vmul.f32 %v373, %v821
    %v886 = vmul.f32 %v374, %v822
    %v887 = vmul.f32 %v375, %v823
    %v888 = vmul.f32 %v376, %v824
    %v889 = vmul.f32 %v377, %v825
    %v890 = vmul.f32 %v378, %v826
    %v891 = vmul.f32 %v379, %v827
    %v892 = vmul.f32 %v380, %v828
    %v893 = vmul.f32 %v381, %v829
    %v894 = vmul.f32 %v382, %v830
    %v895 = vmul.f32 %v383, %v831
    %v896 = vmul.f32 %v384, %v832
    %v897 = vmul.f32 %v385, %v833
    %v898 = vmul.f32 %v386, %v834
    %v899 = vmul.f32 %v387, %v835
    %v900 = vmul.f32 %v388, %v836
    %v901 = vmul.f32 %v389, %v837
    %v902 = vmul.f32 %v390, %v838
    %v903 = vmul.f32 %v391, %v839
    %v904 = vmul.f32 %v392, %v840
    %v905 = vmul.f32 %v393, %v841
    %v906 = vmul.f32 %v394, %v842
    %v907 = vmul.f32 %v395, %v843
    %v908 = vmul.f32 %v396, %v844
    %v909 = vmul.f32 %v397, %v845
    %v910 = vmul.f32 %v398, %v846
    %v911 = vmul.f32 %v399, %v847
    %v912 = vmul.f32 %v400, %v848
    %v913 = vmul.f32 %v401, %v849
    %v914 = vmul.f32 %v402, %v850
    %v915 = vmul.f32 %v403, %v851
    %v916 = vmul.f32 %v404, %v852
    %v917 = vmul.f32 %v405, %v853
    %v918 = vmul.f32 %v406, %v854
    %v919 = vmul.f32 %v407, %v855
    %v920 = vmul.f32 %v408, %v856
    %v921 = vmul.f32 %v409, %v857
    %v922 = vmul.f32 %v410, %v858
    %v923 = vld [vmem:[%s1] sm:$0x1]
    %v925 = vlaneseq
    %v926 = vshrl.u32 %v925, 7
    %v927 = vsub.s32 0, %v926
    %v928 = vrot.slane %v923, %v927
    %v930 = vmul.f32 %v859, %v928
    %v931 = vmul.f32 %v860, %v928
    %v932 = vmul.f32 %v861, %v928
    %v933 = vmul.f32 %v862, %v928
    %v934 = vmul.f32 %v863, %v928
    %v935 = vmul.f32 %v864, %v928
    %v936 = vmul.f32 %v865, %v928
    %v937 = vmul.f32 %v866, %v928
    %v938 = vmul.f32 %v867, %v928
    %v939 = vmul.f32 %v868, %v928
    %v940 = vmul.f32 %v869, %v928
    %v941 = vmul.f32 %v870, %v928
    %v942 = vmul.f32 %v871, %v928
    %v943 = vmul.f32 %v872, %v928
    %v944 = vmul.f32 %v873, %v928
    %v945 = vmul.f32 %v874, %v928
    %v946 = vmul.f32 %v875, %v928
    %v947 = vmul.f32 %v876, %v928
    %v948 = vmul.f32 %v877, %v928
    %v949 = vmul.f32 %v878, %v928
    %v950 = vmul.f32 %v879, %v928
    %v951 = vmul.f32 %v880, %v928
    %v952 = vmul.f32 %v881, %v928
    %v953 = vmul.f32 %v882, %v928
    %v954 = vmul.f32 %v883, %v928
    %v955 = vmul.f32 %v884, %v928
    %v956 = vmul.f32 %v885, %v928
    %v957 = vmul.f32 %v886, %v928
    %v958 = vmul.f32 %v887, %v928
    %v959 = vmul.f32 %v888, %v928
    %v960 = vmul.f32 %v889, %v928
    %v961 = vmul.f32 %v890, %v928
    %v962 = vmul.f32 %v891, %v928
    %v963 = vmul.f32 %v892, %v928
    %v964 = vmul.f32 %v893, %v928
    %v965 = vmul.f32 %v894, %v928
    %v966 = vmul.f32 %v895, %v928
    %v967 = vmul.f32 %v896, %v928
    %v968 = vmul.f32 %v897, %v928
    %v969 = vmul.f32 %v898, %v928
    %v970 = vmul.f32 %v899, %v928
    %v971 = vmul.f32 %v900, %v928
    %v972 = vmul.f32 %v901, %v928
    %v973 = vmul.f32 %v902, %v928
    %v974 = vmul.f32 %v903, %v928
    %v975 = vmul.f32 %v904, %v928
    %v976 = vmul.f32 %v905, %v928
    %v977 = vmul.f32 %v906, %v928
    %v978 = vmul.f32 %v907, %v928
    %v979 = vmul.f32 %v908, %v928
    %v980 = vmul.f32 %v909, %v928
    %v981 = vmul.f32 %v910, %v928
    %v982 = vmul.f32 %v911, %v928
    %v983 = vmul.f32 %v912, %v928
    %v984 = vmul.f32 %v913, %v928
    %v985 = vmul.f32 %v914, %v928
    %v986 = vmul.f32 %v915, %v928
    %v987 = vmul.f32 %v916, %v928
    %v988 = vmul.f32 %v917, %v928
    %v989 = vmul.f32 %v918, %v928
    %v990 = vmul.f32 %v919, %v928
    %v991 = vmul.f32 %v920, %v928
    %v992 = vmul.f32 %v921, %v928
    %v993 = vmul.f32 %v922, %v928
    %v994 = vld [vmem:[%s2] sm:$0x1]
    %v996 = vlaneseq
    %v997 = vshrl.u32 %v996, 7
    %v998 = vsub.s32 0, %v997
    %v999 = vrot.slane %v994, %v998
    %v1001 = vadd.f32 %v930, %v999
    %v1002 = vadd.f32 %v931, %v999
    %v1003 = vadd.f32 %v932, %v999
    %v1004 = vadd.f32 %v933, %v999
    %v1005 = vadd.f32 %v934, %v999
    %v1006 = vadd.f32 %v935, %v999
    %v1007 = vadd.f32 %v936, %v999
    %v1008 = vadd.f32 %v937, %v999
    %v1009 = vadd.f32 %v938, %v999
    %v1010 = vadd.f32 %v939, %v999
    %v1011 = vadd.f32 %v940, %v999
    %v1012 = vadd.f32 %v941, %v999
    %v1013 = vadd.f32 %v942, %v999
    %v1014 = vadd.f32 %v943, %v999
    %v1015 = vadd.f32 %v944, %v999
    %v1016 = vadd.f32 %v945, %v999
    %v1017 = vadd.f32 %v946, %v999
    %v1018 = vadd.f32 %v947, %v999
    %v1019 = vadd.f32 %v948, %v999
    %v1020 = vadd.f32 %v949, %v999
    %v1021 = vadd.f32 %v950, %v999
    %v1022 = vadd.f32 %v951, %v999
    %v1023 = vadd.f32 %v952, %v999
    %v1024 = vadd.f32 %v953, %v999
    %v1025 = vadd.f32 %v954, %v999
    %v1026 = vadd.f32 %v955, %v999
    %v1027 = vadd.f32 %v956, %v999
    %v1028 = vadd.f32 %v957, %v999
    %v1029 = vadd.f32 %v958, %v999
    %v1030 = vadd.f32 %v959, %v999
    %v1031 = vadd.f32 %v960, %v999
    %v1032 = vadd.f32 %v961, %v999
    %v1033 = vadd.f32 %v962, %v999
    %v1034 = vadd.f32 %v963, %v999
    %v1035 = vadd.f32 %v964, %v999
    %v1036 = vadd.f32 %v965, %v999
    %v1037 = vadd.f32 %v966, %v999
    %v1038 = vadd.f32 %v967, %v999
    %v1039 = vadd.f32 %v968, %v999
    %v1040 = vadd.f32 %v969, %v999
    %v1041 = vadd.f32 %v970, %v999
    %v1042 = vadd.f32 %v971, %v999
    %v1043 = vadd.f32 %v972, %v999
    %v1044 = vadd.f32 %v973, %v999
    %v1045 = vadd.f32 %v974, %v999
    %v1046 = vadd.f32 %v975, %v999
    %v1047 = vadd.f32 %v976, %v999
    %v1048 = vadd.f32 %v977, %v999
    %v1049 = vadd.f32 %v978, %v999
    %v1050 = vadd.f32 %v979, %v999
    %v1051 = vadd.f32 %v980, %v999
    %v1052 = vadd.f32 %v981, %v999
    %v1053 = vadd.f32 %v982, %v999
    %v1054 = vadd.f32 %v983, %v999
    %v1055 = vadd.f32 %v984, %v999
    %v1056 = vadd.f32 %v985, %v999
    %v1057 = vadd.f32 %v986, %v999
    %v1058 = vadd.f32 %v987, %v999
    %v1059 = vadd.f32 %v988, %v999
    %v1060 = vadd.f32 %v989, %v999
    %v1061 = vadd.f32 %v990, %v999
    %v1062 = vadd.f32 %v991, %v999
    %v1063 = vadd.f32 %v992, %v999
    %v1064 = vadd.f32 %v993, %v999
    %v1065 = vpack.c.bf16 %v1002, %v1001
    %v1066 = vpack.c.bf16 %v1004, %v1003
    %v1067 = vpack.c.bf16 %v1006, %v1005
    %v1068 = vpack.c.bf16 %v1008, %v1007
    %v1069 = vpack.c.bf16 %v1010, %v1009
    %v1070 = vpack.c.bf16 %v1012, %v1011
    %v1071 = vpack.c.bf16 %v1014, %v1013
    %v1072 = vpack.c.bf16 %v1016, %v1015
    %v1073 = vpack.c.bf16 %v1018, %v1017
    %v1074 = vpack.c.bf16 %v1020, %v1019
    %v1075 = vpack.c.bf16 %v1022, %v1021
    %v1076 = vpack.c.bf16 %v1024, %v1023
    %v1077 = vpack.c.bf16 %v1026, %v1025
    %v1078 = vpack.c.bf16 %v1028, %v1027
    %v1079 = vpack.c.bf16 %v1030, %v1029
    %v1080 = vpack.c.bf16 %v1032, %v1031
    %v1081 = vpack.c.bf16 %v1034, %v1033
    %v1082 = vpack.c.bf16 %v1036, %v1035
    %v1083 = vpack.c.bf16 %v1038, %v1037
    %v1084 = vpack.c.bf16 %v1040, %v1039
    %v1085 = vpack.c.bf16 %v1042, %v1041
    %v1086 = vpack.c.bf16 %v1044, %v1043
    %v1087 = vpack.c.bf16 %v1046, %v1045
    %v1088 = vpack.c.bf16 %v1048, %v1047
    %v1089 = vpack.c.bf16 %v1050, %v1049
    %v1090 = vpack.c.bf16 %v1052, %v1051
    %v1091 = vpack.c.bf16 %v1054, %v1053
    %v1092 = vpack.c.bf16 %v1056, %v1055
    %v1093 = vpack.c.bf16 %v1058, %v1057
    %v1094 = vpack.c.bf16 %v1060, %v1059
    %v1095 = vpack.c.bf16 %v1062, %v1061
    %v1096 = vpack.c.bf16 %v1064, %v1063
    %v1129 = vunpack.c.l.b16 %v1065
    %v1130 = vunpack.c.h.b16 %v1065
    %v1131 = vunpack.c.l.b16 %v1066
    %v1132 = vunpack.c.h.b16 %v1066
    %v1133 = vunpack.c.l.b16 %v1067
    %v1134 = vunpack.c.h.b16 %v1067
    %v1135 = vunpack.c.l.b16 %v1068
    %v1136 = vunpack.c.h.b16 %v1068
    %v1137 = vunpack.c.l.b16 %v1069
    %v1138 = vunpack.c.h.b16 %v1069
    %v1139 = vunpack.c.l.b16 %v1070
    %v1140 = vunpack.c.h.b16 %v1070
    %v1141 = vunpack.c.l.b16 %v1071
    %v1142 = vunpack.c.h.b16 %v1071
    %v1143 = vunpack.c.l.b16 %v1072
    %v1144 = vunpack.c.h.b16 %v1072
    %v1145 = vunpack.c.l.b16 %v1073
    %v1146 = vunpack.c.h.b16 %v1073
    %v1147 = vunpack.c.l.b16 %v1074
    %v1148 = vunpack.c.h.b16 %v1074
    %v1149 = vunpack.c.l.b16 %v1075
    %v1150 = vunpack.c.h.b16 %v1075
    %v1151 = vunpack.c.l.b16 %v1076
    %v1152 = vunpack.c.h.b16 %v1076
    %v1153 = vunpack.c.l.b16 %v1077
    %v1154 = vunpack.c.h.b16 %v1077
    %v1155 = vunpack.c.l.b16 %v1078
    %v1156 = vunpack.c.h.b16 %v1078
    %v1157 = vunpack.c.l.b16 %v1079
    %v1158 = vunpack.c.h.b16 %v1079
    %v1159 = vunpack.c.l.b16 %v1080
    %v1160 = vunpack.c.h.b16 %v1080
    %v1161 = vunpack.c.l.b16 %v1081
    %v1162 = vunpack.c.h.b16 %v1081
    %v1163 = vunpack.c.l.b16 %v1082
    %v1164 = vunpack.c.h.b16 %v1082
    %v1165 = vunpack.c.l.b16 %v1083
    %v1166 = vunpack.c.h.b16 %v1083
    %v1167 = vunpack.c.l.b16 %v1084
    %v1168 = vunpack.c.h.b16 %v1084
    %v1169 = vunpack.c.l.b16 %v1085
    %v1170 = vunpack.c.h.b16 %v1085
    %v1171 = vunpack.c.l.b16 %v1086
    %v1172 = vunpack.c.h.b16 %v1086
    %v1173 = vunpack.c.l.b16 %v1087
    %v1174 = vunpack.c.h.b16 %v1087
    %v1175 = vunpack.c.l.b16 %v1088
    %v1176 = vunpack.c.h.b16 %v1088
    %v1177 = vunpack.c.l.b16 %v1089
    %v1178 = vunpack.c.h.b16 %v1089
    %v1179 = vunpack.c.l.b16 %v1090
    %v1180 = vunpack.c.h.b16 %v1090
    %v1181 = vunpack.c.l.b16 %v1091
    %v1182 = vunpack.c.h.b16 %v1091
    %v1183 = vunpack.c.l.b16 %v1092
    %v1184 = vunpack.c.h.b16 %v1092
    %v1185 = vunpack.c.l.b16 %v1093
    %v1186 = vunpack.c.h.b16 %v1093
    %v1187 = vunpack.c.l.b16 %v1094
    %v1188 = vunpack.c.h.b16 %v1094
    %v1189 = vunpack.c.l.b16 %v1095
    %v1190 = vunpack.c.h.b16 %v1095
    %v1191 = vunpack.c.l.b16 %v1096
    %v1192 = vunpack.c.h.b16 %v1096
    %v1193 = vpack.c.b16 %v1129, %v1129
    %v1194 = vpack.c.b16 %v1130, %v1130
    %v1195 = vpack.c.b16 %v1131, %v1131
    %v1196 = vpack.c.b16 %v1132, %v1132
    %v1197 = vpack.c.b16 %v1133, %v1133
    %v1198 = vpack.c.b16 %v1134, %v1134
    %v1199 = vpack.c.b16 %v1135, %v1135
    %v1200 = vpack.c.b16 %v1136, %v1136
    %v1201 = vpack.c.b16 %v1137, %v1137
    %v1202 = vpack.c.b16 %v1138, %v1138
    %v1203 = vpack.c.b16 %v1139, %v1139
    %v1204 = vpack.c.b16 %v1140, %v1140
    %v1205 = vpack.c.b16 %v1141, %v1141
    %v1206 = vpack.c.b16 %v1142, %v1142
    %v1207 = vpack.c.b16 %v1143, %v1143
    %v1208 = vpack.c.b16 %v1144, %v1144
    %v1209 = vpack.c.b16 %v1145, %v1145
    %v1210 = vpack.c.b16 %v1146, %v1146
    %v1211 = vpack.c.b16 %v1147, %v1147
    %v1212 = vpack.c.b16 %v1148, %v1148
    %v1213 = vpack.c.b16 %v1149, %v1149
    %v1214 = vpack.c.b16 %v1150, %v1150
    %v1215 = vpack.c.b16 %v1151, %v1151
    %v1216 = vpack.c.b16 %v1152, %v1152
    %v1217 = vpack.c.b16 %v1153, %v1153
    %v1218 = vpack.c.b16 %v1154, %v1154
    %v1219 = vpack.c.b16 %v1155, %v1155
    %v1220 = vpack.c.b16 %v1156, %v1156
    %v1221 = vpack.c.b16 %v1157, %v1157
    %v1222 = vpack.c.b16 %v1158, %v1158
    %v1223 = vpack.c.b16 %v1159, %v1159
    %v1224 = vpack.c.b16 %v1160, %v1160
    %v1225 = vpack.c.b16 %v1161, %v1161
    %v1226 = vpack.c.b16 %v1162, %v1162
    %v1227 = vpack.c.b16 %v1163, %v1163
    %v1228 = vpack.c.b16 %v1164, %v1164
    %v1229 = vpack.c.b16 %v1165, %v1165
    %v1230 = vpack.c.b16 %v1166, %v1166
    %v1231 = vpack.c.b16 %v1167, %v1167
    %v1232 = vpack.c.b16 %v1168, %v1168
    %v1233 = vpack.c.b16 %v1169, %v1169
    %v1234 = vpack.c.b16 %v1170, %v1170
    %v1235 = vpack.c.b16 %v1171, %v1171
    %v1236 = vpack.c.b16 %v1172, %v1172
    %v1237 = vpack.c.b16 %v1173, %v1173
    %v1238 = vpack.c.b16 %v1174, %v1174
    %v1239 = vpack.c.b16 %v1175, %v1175
    %v1240 = vpack.c.b16 %v1176, %v1176
    %v1241 = vpack.c.b16 %v1177, %v1177
    %v1242 = vpack.c.b16 %v1178, %v1178
    %v1243 = vpack.c.b16 %v1179, %v1179
    %v1244 = vpack.c.b16 %v1180, %v1180
    %v1245 = vpack.c.b16 %v1181, %v1181
    %v1246 = vpack.c.b16 %v1182, %v1182
    %v1247 = vpack.c.b16 %v1183, %v1183
    %v1248 = vpack.c.b16 %v1184, %v1184
    %v1249 = vpack.c.b16 %v1185, %v1185
    %v1250 = vpack.c.b16 %v1186, %v1186
    %v1251 = vpack.c.b16 %v1187, %v1187
    %v1252 = vpack.c.b16 %v1188, %v1188
    %v1253 = vpack.c.b16 %v1189, %v1189
    %v1254 = vpack.c.b16 %v1190, %v1190
    %v1255 = vpack.c.b16 %v1191, %v1191
    %v1256 = vpack.c.b16 %v1192, %v1192
    %vm1321 = vcmask 257024
    %1322 = vst.msk [vmem:[#allocation2] sm:$0xf] %vm1321, %v1193
    %1323 = vst.msk [vmem:[#allocation2 + $0x4] sm:$0xf] %vm1321, %v1194
    %1324 = vst.msk [vmem:[#allocation2 + $0x8] sm:$0xf] %vm1321, %v1195
    %1325 = vst.msk [vmem:[#allocation2 + $0xc] sm:$0xf] %vm1321, %v1196
    %1326 = vst.msk [vmem:[#allocation2 + $0x10] sm:$0xf] %vm1321, %v1197
    %1327 = vst.msk [vmem:[#allocation2 + $0x14] sm:$0xf] %vm1321, %v1198
    %1328 = vst.msk [vmem:[#allocation2 + $0x18] sm:$0xf] %vm1321, %v1199
    %1329 = vst.msk [vmem:[#allocation2 + $0x1c] sm:$0xf] %vm1321, %v1200
    %1330 = vst.msk [vmem:[#allocation2 + $0x20] sm:$0xf] %vm1321, %v1201
    %1331 = vst.msk [vmem:[#allocation2 + $0x24] sm:$0xf] %vm1321, %v1202
    %1332 = vst.msk [vmem:[#allocation2 + $0x28] sm:$0xf] %vm1321, %v1203
    %1333 = vst.msk [vmem:[#allocation2 + $0x2c] sm:$0xf] %vm1321, %v1204
    %1334 = vst.msk [vmem:[#allocation2 + $0x30] sm:$0xf] %vm1321, %v1205
    %1335 = vst.msk [vmem:[#allocation2 + $0x34] sm:$0xf] %vm1321, %v1206
    %1336 = vst.msk [vmem:[#allocation2 + $0x38] sm:$0xf] %vm1321, %v1207
    %1337 = vst.msk [vmem:[#allocation2 + $0x3c] sm:$0xf] %vm1321, %v1208
    %1338 = vst.msk [vmem:[#allocation2 + $0x40] sm:$0xf] %vm1321, %v1209
    %1339 = vst.msk [vmem:[#allocation2 + $0x44] sm:$0xf] %vm1321, %v1210
    %1340 = vst.msk [vmem:[#allocation2 + $0x48] sm:$0xf] %vm1321, %v1211
    %1341 = vst.msk [vmem:[#allocation2 + $0x4c] sm:$0xf] %vm1321, %v1212
    %1342 = vst.msk [vmem:[#allocation2 + $0x50] sm:$0xf] %vm1321, %v1213
    %1343 = vst.msk [vmem:[#allocation2 + $0x54] sm:$0xf] %vm1321, %v1214
    %1344 = vst.msk [vmem:[#allocation2 + $0x58] sm:$0xf] %vm1321, %v1215
    %1345 = vst.msk [vmem:[#allocation2 + $0x5c] sm:$0xf] %vm1321, %v1216
    %1346 = vst.msk [vmem:[#allocation2 + $0x60] sm:$0xf] %vm1321, %v1217
    %1347 = vst.msk [vmem:[#allocation2 + $0x64] sm:$0xf] %vm1321, %v1218
    %1348 = vst.msk [vmem:[#allocation2 + $0x68] sm:$0xf] %vm1321, %v1219
    %1349 = vst.msk [vmem:[#allocation2 + $0x6c] sm:$0xf] %vm1321, %v1220
    %1350 = vst.msk [vmem:[#allocation2 + $0x70] sm:$0xf] %vm1321, %v1221
    %1351 = vst.msk [vmem:[#allocation2 + $0x74] sm:$0xf] %vm1321, %v1222
    %1352 = vst.msk [vmem:[#allocation2 + $0x78] sm:$0xf] %vm1321, %v1223
    %1353 = vst.msk [vmem:[#allocation2 + $0x7c] sm:$0xf] %vm1321, %v1224
    %1354 = vst.msk [vmem:[#allocation2 + $0x80] sm:$0xf] %vm1321, %v1225
    %1355 = vst.msk [vmem:[#allocation2 + $0x84] sm:$0xf] %vm1321, %v1226
    %1356 = vst.msk [vmem:[#allocation2 + $0x88] sm:$0xf] %vm1321, %v1227
    %1357 = vst.msk [vmem:[#allocation2 + $0x8c] sm:$0xf] %vm1321, %v1228
    %1358 = vst.msk [vmem:[#allocation2 + $0x90] sm:$0xf] %vm1321, %v1229
    %1359 = vst.msk [vmem:[#allocation2 + $0x94] sm:$0xf] %vm1321, %v1230
    %1360 = vst.msk [vmem:[#allocation2 + $0x98] sm:$0xf] %vm1321, %v1231
    %1361 = vst.msk [vmem:[#allocation2 + $0x9c] sm:$0xf] %vm1321, %v1232
    %1362 = vst.msk [vmem:[#allocation2 + $0xa0] sm:$0xf] %vm1321, %v1233
    %1363 = vst.msk [vmem:[#allocation2 + $0xa4] sm:$0xf] %vm1321, %v1234
    %1364 = vst.msk [vmem:[#allocation2 + $0xa8] sm:$0xf] %vm1321, %v1235
    %1365 = vst.msk [vmem:[#allocation2 + $0xac] sm:$0xf] %vm1321, %v1236
    %1366 = vst.msk [vmem:[#allocation2 + $0xb0] sm:$0xf] %vm1321, %v1237
    %1367 = vst.msk [vmem:[#allocation2 + $0xb4] sm:$0xf] %vm1321, %v1238
    %1368 = vst.msk [vmem:[#allocation2 + $0xb8] sm:$0xf] %vm1321, %v1239
    %1369 = vst.msk [vmem:[#allocation2 + $0xbc] sm:$0xf] %vm1321, %v1240
    %1370 = vst.msk [vmem:[#allocation2 + $0xc0] sm:$0xf] %vm1321, %v1241
    %1371 = vst.msk [vmem:[#allocation2 + $0xc4] sm:$0xf] %vm1321, %v1242
    %1372 = vst.msk [vmem:[#allocation2 + $0xc8] sm:$0xf] %vm1321, %v1243
    %1373 = vst.msk [vmem:[#allocation2 + $0xcc] sm:$0xf] %vm1321, %v1244
    %1374 = vst.msk [vmem:[#allocation2 + $0xd0] sm:$0xf] %vm1321, %v1245
    %1375 = vst.msk [vmem:[#allocation2 + $0xd4] sm:$0xf] %vm1321, %v1246
    %1376 = vst.msk [vmem:[#allocation2 + $0xd8] sm:$0xf] %vm1321, %v1247
    %1377 = vst.msk [vmem:[#allocation2 + $0xdc] sm:$0xf] %vm1321, %v1248
    %1378 = vst.msk [vmem:[#allocation2 + $0xe0] sm:$0xf] %vm1321, %v1249
    %1379 = vst.msk [vmem:[#allocation2 + $0xe4] sm:$0xf] %vm1321, %v1250
    %1380 = vst.msk [vmem:[#allocation2 + $0xe8] sm:$0xf] %vm1321, %v1251
    %1381 = vst.msk [vmem:[#allocation2 + $0xec] sm:$0xf] %vm1321, %v1252
    %1382 = vst.msk [vmem:[#allocation2 + $0xf0] sm:$0xf] %vm1321, %v1253
    %1383 = vst.msk [vmem:[#allocation2 + $0xf4] sm:$0xf] %vm1321, %v1254
    %1384 = vst.msk [vmem:[#allocation2 + $0xf8] sm:$0xf] %vm1321, %v1255
    %1385 = vst.msk [vmem:[#allocation2 + $0xfc] sm:$0xf] %vm1321, %v1256
  $region25: #{tpu_custom_call.1} parent=0 // pred_fallthru
    _
  %v1386 = vld [vmem:[#allocation2] sm:$0xf]
  %v1387 = vld [vmem:[#allocation2 + $0x4] sm:$0xf]
  %v1388 = vld [vmem:[#allocation2 + $0x8] sm:$0xf]
  %v1389 = vld [vmem:[#allocation2 + $0xc] sm:$0xf]
  %v1390 = vld [vmem:[#allocation2 + $0x10] sm:$0xf]
  %v1391 = vld [vmem:[#allocation2 + $0x14] sm:$0xf]
  %v1392 = vld [vmem:[#allocation2 + $0x18] sm:$0xf]
  %v1393 = vld [vmem:[#allocation2 + $0x1c] sm:$0xf]
  %v1394 = vld [vmem:[#allocation2 + $0x20] sm:$0xf]
  %v1395 = vld [vmem:[#allocation2 + $0x24] sm:$0xf]
  %v1396 = vld [vmem:[#allocation2 + $0x28] sm:$0xf]
  %v1397 = vld [vmem:[#allocation2 + $0x2c] sm:$0xf]
  %v1398 = vld [vmem:[#allocation2 + $0x30] sm:$0xf]
  %v1399 = vld [vmem:[#allocation2 + $0x34] sm:$0xf]
  %v1400 = vld [vmem:[#allocation2 + $0x38] sm:$0xf]
  %v1401 = vld [vmem:[#allocation2 + $0x3c] sm:$0xf]
  %v1402 = vld [vmem:[#allocation2 + $0x40] sm:$0xf]
  %v1403 = vld [vmem:[#allocation2 + $0x44] sm:$0xf]
  %v1404 = vld [vmem:[#allocation2 + $0x48] sm:$0xf]
  %v1405 = vld [vmem:[#allocation2 + $0x4c] sm:$0xf]
  %v1406 = vld [vmem:[#allocation2 + $0x50] sm:$0xf]
  %v1407 = vld [vmem:[#allocation2 + $0x54] sm:$0xf]
  %v1408 = vld [vmem:[#allocation2 + $0x58] sm:$0xf]
  %v1409 = vld [vmem:[#allocation2 + $0x5c] sm:$0xf]
  %v1410 = vld [vmem:[#allocation2 + $0x60] sm:$0xf]
  %v1411 = vld [vmem:[#allocation2 + $0x64] sm:$0xf]
  %v1412 = vld [vmem:[#allocation2 + $0x68] sm:$0xf]
  %v1413 = vld [vmem:[#allocation2 + $0x6c] sm:$0xf]
  %v1414 = vld [vmem:[#allocation2 + $0x70] sm:$0xf]
  %v1415 = vld [vmem:[#allocation2 + $0x74] sm:$0xf]
  %v1416 = vld [vmem:[#allocation2 + $0x78] sm:$0xf]
  %v1417 = vld [vmem:[#allocation2 + $0x7c] sm:$0xf]
  %v1418 = vld [vmem:[#allocation2 + $0x80] sm:$0xf]
  %v1419 = vld [vmem:[#allocation2 + $0x84] sm:$0xf]
  %v1420 = vld [vmem:[#allocation2 + $0x88] sm:$0xf]
  %v1421 = vld [vmem:[#allocation2 + $0x8c] sm:$0xf]
  %v1422 = vld [vmem:[#allocation2 + $0x90] sm:$0xf]
  %v1423 = vld [vmem:[#allocation2 + $0x94] sm:$0xf]
  %v1424 = vld [vmem:[#allocation2 + $0x98] sm:$0xf]
  %v1425 = vld [vmem:[#allocation2 + $0x9c] sm:$0xf]
  %v1426 = vld [vmem:[#allocation2 + $0xa0] sm:$0xf]
  %v1427 = vld [vmem:[#allocation2 + $0xa4] sm:$0xf]
  %v1428 = vld [vmem:[#allocation2 + $0xa8] sm:$0xf]
  %v1429 = vld [vmem:[#allocation2 + $0xac] sm:$0xf]
  %v1430 = vld [vmem:[#allocation2 + $0xb0] sm:$0xf]
  %v1431 = vld [vmem:[#allocation2 + $0xb4] sm:$0xf]
  %v1432 = vld [vmem:[#allocation2 + $0xb8] sm:$0xf]
  %v1433 = vld [vmem:[#allocation2 + $0xbc] sm:$0xf]
  %v1434 = vld [vmem:[#allocation2 + $0xc0] sm:$0xf]
  %v1435 = vld [vmem:[#allocation2 + $0xc4] sm:$0xf]
  %v1436 = vld [vmem:[#allocation2 + $0xc8] sm:$0xf]
  %v1437 = vld [vmem:[#allocation2 + $0xcc] sm:$0xf]
  %v1438 = vld [vmem:[#allocation2 + $0xd0] sm:$0xf]
  %v1439 = vld [vmem:[#allocation2 + $0xd4] sm:$0xf]
  %v1440 = vld [vmem:[#allocation2 + $0xd8] sm:$0xf]
  %v1441 = vld [vmem:[#allocation2 + $0xdc] sm:$0xf]
  %v1442 = vld [vmem:[#allocation2 + $0xe0] sm:$0xf]
  %v1443 = vld [vmem:[#allocation2 + $0xe4] sm:$0xf]
  %v1444 = vld [vmem:[#allocation2 + $0xe8] sm:$0xf]
  %v1445 = vld [vmem:[#allocation2 + $0xec] sm:$0xf]
  %v1446 = vld [vmem:[#allocation2 + $0xf0] sm:$0xf]
  %v1447 = vld [vmem:[#allocation2 + $0xf4] sm:$0xf]
  %v1448 = vld [vmem:[#allocation2 + $0xf8] sm:$0xf]
  %v1449 = vld [vmem:[#allocation2 + $0xfc] sm:$0xf]
  %v1450 = vld [vmem:[%s3] sm:$0xf]
  %v1451 = vld [vmem:[%s3 + $0x4] sm:$0xf]
  %v1452 = vld [vmem:[%s3 + $0x8] sm:$0xf]
  %v1453 = vld [vmem:[%s3 + $0xc] sm:$0xf]
  %v1454 = vld [vmem:[%s4] sm:$0x1]
  %v1456 = vlaneseq
  %v1457 = vshrl.u32 %v1456, 7
  %v1458 = vsub.s32 0, %v1457
  %v1459 = vrot.slane %v1454, %v1458
  %v1525 = vunpack.c.l.b16 %v1386
  %v1526 = vunpack.c.l.b16 %v1387
  %v1527 = vunpack.c.l.b16 %v1388
  %v1528 = vunpack.c.l.b16 %v1389
  %v1529 = vunpack.c.l.b16 %v1390
  %v1530 = vunpack.c.l.b16 %v1391
  %v1531 = vunpack.c.l.b16 %v1392
  %v1532 = vunpack.c.l.b16 %v1393
  %v1533 = vunpack.c.l.b16 %v1394
  %v1534 = vunpack.c.l.b16 %v1395
  %v1535 = vunpack.c.l.b16 %v1396
  %v1536 = vunpack.c.l.b16 %v1397
  %v1537 = vunpack.c.l.b16 %v1398
  %v1538 = vunpack.c.l.b16 %v1399
  %v1539 = vunpack.c.l.b16 %v1400
  %v1540 = vunpack.c.l.b16 %v1401
  %v1541 = vunpack.c.l.b16 %v1402
  %v1542 = vunpack.c.l.b16 %v1403
  %v1543 = vunpack.c.l.b16 %v1404
  %v1544 = vunpack.c.l.b16 %v1405
  %v1545 = vunpack.c.l.b16 %v1406
  %v1546 = vunpack.c.l.b16 %v1407
  %v1547 = vunpack.c.l.b16 %v1408
  %v1548 = vunpack.c.l.b16 %v1409
  %v1549 = vunpack.c.l.b16 %v1410
  %v1550 = vunpack.c.l.b16 %v1411
  %v1551 = vunpack.c.l.b16 %v1412
  %v1552 = vunpack.c.l.b16 %v1413
  %v1553 = vunpack.c.l.b16 %v1414
  %v1554 = vunpack.c.l.b16 %v1415
  %v1555 = vunpack.c.l.b16 %v1416
  %v1556 = vunpack.c.l.b16 %v1417
  %v1557 = vunpack.c.l.b16 %v1418
  %v1558 = vunpack.c.l.b16 %v1419
  %v1559 = vunpack.c.l.b16 %v1420
  %v1560 = vunpack.c.l.b16 %v1421
  %v1561 = vunpack.c.l.b16 %v1422
  %v1562 = vunpack.c.l.b16 %v1423
  %v1563 = vunpack.c.l.b16 %v1424
  %v1564 = vunpack.c.l.b16 %v1425
  %v1565 = vunpack.c.l.b16 %v1426
  %v1566 = vunpack.c.l.b16 %v1427
  %v1567 = vunpack.c.l.b16 %v1428
  %v1568 = vunpack.c.l.b16 %v1429
  %v1569 = vunpack.c.l.b16 %v1430
  %v1570 = vunpack.c.l.b16 %v1431
  %v1571 = vunpack.c.l.b16 %v1432
  %v1572 = vunpack.c.l.b16 %v1433
  %v1573 = vunpack.c.l.b16 %v1434
  %v1574 = vunpack.c.l.b16 %v1435
  %v1575 = vunpack.c.l.b16 %v1436
  %v1576 = vunpack.c.l.b16 %v1437
  %v1577 = vunpack.c.l.b16 %v1438
  %v1578 = vunpack.c.l.b16 %v1439
  %v1579 = vunpack.c.l.b16 %v1440
  %v1580 = vunpack.c.l.b16 %v1441
  %v1581 = vunpack.c.l.b16 %v1442
  %v1582 = vunpack.c.l.b16 %v1443
  %v1583 = vunpack.c.l.b16 %v1444
  %v1584 = vunpack.c.l.b16 %v1445
  %v1585 = vunpack.c.l.b16 %v1446
  %v1586 = vunpack.c.l.b16 %v1447
  %v1587 = vunpack.c.l.b16 %v1448
  %v1588 = vunpack.c.l.b16 %v1449
  %v1589 = vpack.c.b16 %v1526, %v1525
  %v1590 = vpack.c.b16 %v1528, %v1527
  %v1591 = vpack.c.b16 %v1530, %v1529
  %v1592 = vpack.c.b16 %v1532, %v1531
  %v1593 = vpack.c.b16 %v1534, %v1533
  %v1594 = vpack.c.b16 %v1536, %v1535
  %v1595 = vpack.c.b16 %v1538, %v1537
  %v1596 = vpack.c.b16 %v1540, %v1539
  %v1597 = vpack.c.b16 %v1542, %v1541
  %v1598 = vpack.c.b16 %v1544, %v1543
  %v1599 = vpack.c.b16 %v1546, %v1545
  %v1600 = vpack.c.b16 %v1548, %v1547
  %v1601 = vpack.c.b16 %v1550, %v1549
  %v1602 = vpack.c.b16 %v1552, %v1551
  %v1603 = vpack.c.b16 %v1554, %v1553
  %v1604 = vpack.c.b16 %v1556, %v1555
  %v1605 = vpack.c.b16 %v1558, %v1557
  %v1606 = vpack.c.b16 %v1560, %v1559
  %v1607 = vpack.c.b16 %v1562, %v1561
  %v1608 = vpack.c.b16 %v1564, %v1563
  %v1609 = vpack.c.b16 %v1566, %v1565
  %v1610 = vpack.c.b16 %v1568, %v1567
  %v1611 = vpack.c.b16 %v1570, %v1569
  %v1612 = vpack.c.b16 %v1572, %v1571
  %v1613 = vpack.c.b16 %v1574, %v1573
  %v1614 = vpack.c.b16 %v1576, %v1575
  %v1615 = vpack.c.b16 %v1578, %v1577
  %v1616 = vpack.c.b16 %v1580, %v1579
  %v1617 = vpack.c.b16 %v1582, %v1581
  %v1618 = vpack.c.b16 %v1584, %v1583
  %v1619 = vpack.c.b16 %v1586, %v1585
  %v1620 = vpack.c.b16 %v1588, %v1587
  %v1625 = vunpack.c.l.b16 %v1450
  %v1626 = vunpack.c.l.b16 %v1451
  %v1627 = vunpack.c.l.b16 %v1452
  %v1628 = vunpack.c.l.b16 %v1453
  %v1629 = vpack.c.b16 %v1626, %v1625
  %v1630 = vpack.c.b16 %v1628, %v1627
  %vm1633 = vcmask 261120
  %v1635 = vsel %vm1633, %v1589, 0
  %v1638 = vsel %vm1633, %v1590, 0
  %v1641 = vsel %vm1633, %v1591, 0
  %v1644 = vsel %vm1633, %v1592, 0
  %v1647 = vsel %vm1633, %v1593, 0
  %v1650 = vsel %vm1633, %v1594, 0
  %v1653 = vsel %vm1633, %v1595, 0
  %v1656 = vsel %vm1633, %v1596, 0
  %v1659 = vsel %vm1633, %v1597, 0
  %v1662 = vsel %vm1633, %v1598, 0
  %v1665 = vsel %vm1633, %v1599, 0
  %v1668 = vsel %vm1633, %v1600, 0
  %v1671 = vsel %vm1633, %v1601, 0
  %v1674 = vsel %vm1633, %v1602, 0
  %v1677 = vsel %vm1633, %v1603, 0
  %v1680 = vsel %vm1633, %v1604, 0
  %v1683 = vsel %vm1633, %v1605, 0
  %v1686 = vsel %vm1633, %v1606, 0
  %v1689 = vsel %vm1633, %v1607, 0
  %v1692 = vsel %vm1633, %v1608, 0
  %v1695 = vsel %vm1633, %v1609, 0
  %v1698 = vsel %vm1633, %v1610, 0
  %v1701 = vsel %vm1633, %v1611, 0
  %v1704 = vsel %vm1633, %v1612, 0
  %v1707 = vsel %vm1633, %v1613, 0
  %v1710 = vsel %vm1633, %v1614, 0
  %v1713 = vsel %vm1633, %v1615, 0
  %v1716 = vsel %vm1633, %v1616, 0
  %v1719 = vsel %vm1633, %v1617, 0
  %v1722 = vsel %vm1633, %v1618, 0
  %v1725 = vsel %vm1633, %v1619, 0
  %v1728 = vsel %vm1633, %v1620, 0
  %1730 = vmatprep.subr.bf16.mxu0 0
  %1731 = vmatpush1.bf16.msra.mxu0 0
  %1732 = vmatprep.subr.bf16.mxu0 0
  %1733 = vmatpush1.bf16.msra.mxu0 0
  %1734 = vmatprep.subr.bf16.mxu0 0
  %1735 = vmatpush1.bf16.msra.mxu0 0
  %1736 = vmatprep.subr.bf16.mxu0 0
  %1737 = vmatpush1.bf16.msra.mxu0 0
  %1738 = vmatprep.subr.bf16.mxu0 0
  %1739 = vmatpush1.bf16.msra.mxu0 0
  %1740 = vmatprep.subr.bf16.mxu0 0
  %1741 = vmatpush1.bf16.msra.mxu0 0
  %1742 = vmatprep.subr.bf16.mxu0 0
  %1743 = vmatpush1.bf16.msra.mxu0 %v1630
  %1744 = vmatprep.subr.bf16.mxu0 0
  %1745 = vmatpush1.bf16.msra.mxu0 %v1629
  %1746 = vmatprep.subr.bf16.mxu0 0
  %1747 = vmatpush2.bf16.msra.mxu0 0
  %1748 = vmatprep.subr.bf16.mxu0 0
  %1749 = vmatpush2.bf16.msra.mxu0 0
  %1750 = vmatprep.subr.bf16.mxu0 0
  %1751 = vmatpush2.bf16.msra.mxu0 0
  %1752 = vmatprep.subr.bf16.mxu0 0
  %1753 = vmatpush2.bf16.msra.mxu0 0
  %1754 = vmatprep.subr.bf16.mxu0 0
  %1755 = vmatpush2.bf16.msra.mxu0 0
  %1756 = vmatprep.subr.bf16.mxu0 0
  %1757 = vmatpush2.bf16.msra.mxu0 0
  %1758 = vmatprep.subr.bf16.mxu0 0
  %1759 = vmatpush2.bf16.msra.mxu0 0
  %1760 = vmatprep.subr.bf16.mxu0 0
  %1761 = vmatpush2.bf16.msra.mxu0 0
  %1762 = vmatprep.mubr.bf16.mxu0 0
  %1763 = vmatmul.mubr.bf16.gmra.mxu0 %v1635
  %v1764 = vpop.f32.mrf.mxu0
  %v1765 = vadd.f32 %v1459, %v1764
  %v1766 = vpop.f32.mrf.mxu0
  %v1767 = vpop.f32.mrf.mxu0
  %v1768 = vadd.f32 %v1459, %v1767
  %v1769 = vpop.f32.mrf.mxu0
  %1770 = vmatprep.mubr.bf16.mxu0 0
  %1771 = vmatmul.mubr.bf16.gmra.mxu0 %v1638
  %v1772 = vpop.f32.mrf.mxu0
  %v1773 = vadd.f32 %v1459, %v1772
  %v1774 = vpop.f32.mrf.mxu0
  %v1775 = vpop.f32.mrf.mxu0
  %v1776 = vadd.f32 %v1459, %v1775
  %v1777 = vpop.f32.mrf.mxu0
  %1778 = vmatprep.mubr.bf16.mxu0 0
  %1779 = vmatmul.mubr.bf16.gmra.mxu0 %v1641
  %v1780 = vpop.f32.mrf.mxu0
  %v1781 = vadd.f32 %v1459, %v1780
  %v1782 = vpop.f32.mrf.mxu0
  %v1783 = vpop.f32.mrf.mxu0
  %v1784 = vadd.f32 %v1459, %v1783
  %v1785 = vpop.f32.mrf.mxu0
  %1786 = vmatprep.mubr.bf16.mxu0 0
  %1787 = vmatmul.mubr.bf16.gmra.mxu0 %v1644
  %v1788 = vpop.f32.mrf.mxu0
  %v1789 = vadd.f32 %v1459, %v1788
  %v1790 = vpop.f32.mrf.mxu0
  %v1791 = vpop.f32.mrf.mxu0
  %v1792 = vadd.f32 %v1459, %v1791
  %v1793 = vpop.f32.mrf.mxu0
  %1794 = vmatprep.mubr.bf16.mxu0 0
  %1795 = vmatmul.mubr.bf16.gmra.mxu0 %v1647
  %v1796 = vpop.f32.mrf.mxu0
  %v1797 = vadd.f32 %v1459, %v1796
  %v1798 = vpop.f32.mrf.mxu0
  %v1799 = vpop.f32.mrf.mxu0
  %v1800 = vadd.f32 %v1459, %v1799
  %v1801 = vpop.f32.mrf.mxu0
  %1802 = vmatprep.mubr.bf16.mxu0 0
  %1803 = vmatmul.mubr.bf16.gmra.mxu0 %v1650
  %v1804 = vpop.f32.mrf.mxu0
  %v1805 = vadd.f32 %v1459, %v1804
  %v1806 = vpop.f32.mrf.mxu0
  %v1807 = vpop.f32.mrf.mxu0
  %v1808 = vadd.f32 %v1459, %v1807
  %v1809 = vpop.f32.mrf.mxu0
  %1810 = vmatprep.mubr.bf16.mxu0 0
  %1811 = vmatmul.mubr.bf16.gmra.mxu0 %v1653
  %v1812 = vpop.f32.mrf.mxu0
  %v1813 = vadd.f32 %v1459, %v1812
  %v1814 = vpop.f32.mrf.mxu0
  %v1815 = vpop.f32.mrf.mxu0
  %v1816 = vadd.f32 %v1459, %v1815
  %v1817 = vpop.f32.mrf.mxu0
  %1818 = vmatprep.mubr.bf16.mxu0 0
  %1819 = vmatmul.mubr.bf16.gmra.mxu0 %v1656
  %v1820 = vpop.f32.mrf.mxu0
  %v1821 = vadd.f32 %v1459, %v1820
  %v1822 = vpop.f32.mrf.mxu0
  %v1823 = vpop.f32.mrf.mxu0
  %v1824 = vadd.f32 %v1459, %v1823
  %v1825 = vpop.f32.mrf.mxu0
  %1826 = vmatprep.mubr.bf16.mxu0 0
  %1827 = vmatmul.mubr.bf16.gmra.mxu0 %v1659
  %v1828 = vpop.f32.mrf.mxu0
  %v1829 = vadd.f32 %v1459, %v1828
  %v1830 = vpop.f32.mrf.mxu0
  %v1831 = vpop.f32.mrf.mxu0
  %v1832 = vadd.f32 %v1459, %v1831
  %v1833 = vpop.f32.mrf.mxu0
  %1834 = vmatprep.mubr.bf16.mxu0 0
  %1835 = vmatmul.mubr.bf16.gmra.mxu0 %v1662
  %v1836 = vpop.f32.mrf.mxu0
  %v1837 = vadd.f32 %v1459, %v1836
  %v1838 = vpop.f32.mrf.mxu0
  %v1839 = vpop.f32.mrf.mxu0
  %v1840 = vadd.f32 %v1459, %v1839
  %v1841 = vpop.f32.mrf.mxu0
  %1842 = vmatprep.mubr.bf16.mxu0 0
  %1843 = vmatmul.mubr.bf16.gmra.mxu0 %v1665
  %v1844 = vpop.f32.mrf.mxu0
  %v1845 = vadd.f32 %v1459, %v1844
  %v1846 = vpop.f32.mrf.mxu0
  %v1847 = vpop.f32.mrf.mxu0
  %v1848 = vadd.f32 %v1459, %v1847
  %v1849 = vpop.f32.mrf.mxu0
  %1850 = vmatprep.mubr.bf16.mxu0 0
  %1851 = vmatmul.mubr.bf16.gmra.mxu0 %v1668
  %v1852 = vpop.f32.mrf.mxu0
  %v1853 = vadd.f32 %v1459, %v1852
  %v1854 = vpop.f32.mrf.mxu0
  %v1855 = vpop.f32.mrf.mxu0
  %v1856 = vadd.f32 %v1459, %v1855
  %v1857 = vpop.f32.mrf.mxu0
  %1858 = vmatprep.mubr.bf16.mxu0 0
  %1859 = vmatmul.mubr.bf16.gmra.mxu0 %v1671
  %v1860 = vpop.f32.mrf.mxu0
  %v1861 = vadd.f32 %v1459, %v1860
  %v1862 = vpop.f32.mrf.mxu0
  %v1863 = vpop.f32.mrf.mxu0
  %v1864 = vadd.f32 %v1459, %v1863
  %v1865 = vpop.f32.mrf.mxu0
  %1866 = vmatprep.mubr.bf16.mxu0 0
  %1867 = vmatmul.mubr.bf16.gmra.mxu0 %v1674
  %v1868 = vpop.f32.mrf.mxu0
  %v1869 = vadd.f32 %v1459, %v1868
  %v1870 = vpop.f32.mrf.mxu0
  %v1871 = vpop.f32.mrf.mxu0
  %v1872 = vadd.f32 %v1459, %v1871
  %v1873 = vpop.f32.mrf.mxu0
  %1874 = vmatprep.mubr.bf16.mxu0 0
  %1875 = vmatmul.mubr.bf16.gmra.mxu0 %v1677
  %v1876 = vpop.f32.mrf.mxu0
  %v1877 = vadd.f32 %v1459, %v1876
  %v1878 = vpop.f32.mrf.mxu0
  %v1879 = vpop.f32.mrf.mxu0
  %v1880 = vadd.f32 %v1459, %v1879
  %v1881 = vpop.f32.mrf.mxu0
  %1882 = vmatprep.mubr.bf16.mxu0 0
  %1883 = vmatmul.mubr.bf16.gmra.mxu0 %v1680
  %v1884 = vpop.f32.mrf.mxu0
  %v1885 = vadd.f32 %v1459, %v1884
  %v1886 = vpop.f32.mrf.mxu0
  %v1887 = vpop.f32.mrf.mxu0
  %v1888 = vadd.f32 %v1459, %v1887
  %v1889 = vpop.f32.mrf.mxu0
  %1890 = vmatprep.mubr.bf16.mxu0 0
  %1891 = vmatmul.mubr.bf16.gmra.mxu0 %v1683
  %v1892 = vpop.f32.mrf.mxu0
  %v1893 = vadd.f32 %v1459, %v1892
  %v1894 = vpop.f32.mrf.mxu0
  %v1895 = vpop.f32.mrf.mxu0
  %v1896 = vadd.f32 %v1459, %v1895
  %v1897 = vpop.f32.mrf.mxu0
  %1898 = vmatprep.mubr.bf16.mxu0 0
  %1899 = vmatmul.mubr.bf16.gmra.mxu0 %v1686
  %v1900 = vpop.f32.mrf.mxu0
  %v1901 = vadd.f32 %v1459, %v1900
  %v1902 = vpop.f32.mrf.mxu0
  %v1903 = vpop.f32.mrf.mxu0
  %v1904 = vadd.f32 %v1459, %v1903
  %v1905 = vpop.f32.mrf.mxu0
  %1906 = vmatprep.mubr.bf16.mxu0 0
  %1907 = vmatmul.mubr.bf16.gmra.mxu0 %v1689
  %v1908 = vpop.f32.mrf.mxu0
  %v1909 = vadd.f32 %v1459, %v1908
  %v1910 = vpop.f32.mrf.mxu0
  %v1911 = vpop.f32.mrf.mxu0
  %v1912 = vadd.f32 %v1459, %v1911
  %v1913 = vpop.f32.mrf.mxu0
  %1914 = vmatprep.mubr.bf16.mxu0 0
  %1915 = vmatmul.mubr.bf16.gmra.mxu0 %v1692
  %v1916 = vpop.f32.mrf.mxu0
  %v1917 = vadd.f32 %v1459, %v1916
  %v1918 = vpop.f32.mrf.mxu0
  %v1919 = vpop.f32.mrf.mxu0
  %v1920 = vadd.f32 %v1459, %v1919
  %v1921 = vpop.f32.mrf.mxu0
  %1922 = vmatprep.mubr.bf16.mxu0 0
  %1923 = vmatmul.mubr.bf16.gmra.mxu0 %v1695
  %v1924 = vpop.f32.mrf.mxu0
  %v1925 = vadd.f32 %v1459, %v1924
  %v1926 = vpop.f32.mrf.mxu0
  %v1927 = vpop.f32.mrf.mxu0
  %v1928 = vadd.f32 %v1459, %v1927
  %v1929 = vpop.f32.mrf.mxu0
  %1930 = vmatprep.mubr.bf16.mxu0 0
  %1931 = vmatmul.mubr.bf16.gmra.mxu0 %v1698
  %v1932 = vpop.f32.mrf.mxu0
  %v1933 = vadd.f32 %v1459, %v1932
  %v1934 = vpop.f32.mrf.mxu0
  %v1935 = vpop.f32.mrf.mxu0
  %v1936 = vadd.f32 %v1459, %v1935
  %v1937 = vpop.f32.mrf.mxu0
  %1938 = vmatprep.mubr.bf16.mxu0 0
  %1939 = vmatmul.mubr.bf16.gmra.mxu0 %v1701
  %v1940 = vpop.f32.mrf.mxu0
  %v1941 = vadd.f32 %v1459, %v1940
  %v1942 = vpop.f32.mrf.mxu0
  %v1943 = vpop.f32.mrf.mxu0
  %v1944 = vadd.f32 %v1459, %v1943
  %v1945 = vpop.f32.mrf.mxu0
  %1946 = vmatprep.mubr.bf16.mxu0 0
  %1947 = vmatmul.mubr.bf16.gmra.mxu0 %v1704
  %v1948 = vpop.f32.mrf.mxu0
  %v1949 = vadd.f32 %v1459, %v1948
  %v1950 = vpop.f32.mrf.mxu0
  %v1951 = vpop.f32.mrf.mxu0
  %v1952 = vadd.f32 %v1459, %v1951
  %v1953 = vpop.f32.mrf.mxu0
  %1954 = vmatprep.mubr.bf16.mxu0 0
  %1955 = vmatmul.mubr.bf16.gmra.mxu0 %v1707
  %v1956 = vpop.f32.mrf.mxu0
  %v1957 = vadd.f32 %v1459, %v1956
  %v1958 = vpop.f32.mrf.mxu0
  %v1959 = vpop.f32.mrf.mxu0
  %v1960 = vadd.f32 %v1459, %v1959
  %v1961 = vpop.f32.mrf.mxu0
  %1962 = vmatprep.mubr.bf16.mxu0 0
  %1963 = vmatmul.mubr.bf16.gmra.mxu0 %v1710
  %v1964 = vpop.f32.mrf.mxu0
  %v1965 = vadd.f32 %v1459, %v1964
  %v1966 = vpop.f32.mrf.mxu0
  %v1967 = vpop.f32.mrf.mxu0
  %v1968 = vadd.f32 %v1459, %v1967
  %v1969 = vpop.f32.mrf.mxu0
  %1970 = vmatprep.mubr.bf16.mxu0 0
  %1971 = vmatmul.mubr.bf16.gmra.mxu0 %v1713
  %v1972 = vpop.f32.mrf.mxu0
  %v1973 = vadd.f32 %v1459, %v1972
  %v1974 = vpop.f32.mrf.mxu0
  %v1975 = vpop.f32.mrf.mxu0
  %v1976 = vadd.f32 %v1459, %v1975
  %v1977 = vpop.f32.mrf.mxu0
  %1978 = vmatprep.mubr.bf16.mxu0 0
  %1979 = vmatmul.mubr.bf16.gmra.mxu0 %v1716
  %v1980 = vpop.f32.mrf.mxu0
  %v1981 = vadd.f32 %v1459, %v1980
  %v1982 = vpop.f32.mrf.mxu0
  %v1983 = vpop.f32.mrf.mxu0
  %v1984 = vadd.f32 %v1459, %v1983
  %v1985 = vpop.f32.mrf.mxu0
  %1986 = vmatprep.mubr.bf16.mxu0 0
  %1987 = vmatmul.mubr.bf16.gmra.mxu0 %v1719
  %v1988 = vpop.f32.mrf.mxu0
  %v1989 = vadd.f32 %v1459, %v1988
  %v1990 = vpop.f32.mrf.mxu0
  %v1991 = vpop.f32.mrf.mxu0
  %v1992 = vadd.f32 %v1459, %v1991
  %v1993 = vpop.f32.mrf.mxu0
  %1994 = vmatprep.mubr.bf16.mxu0 0
  %1995 = vmatmul.mubr.bf16.gmra.mxu0 %v1722
  %v1996 = vpop.f32.mrf.mxu0
  %v1997 = vadd.f32 %v1459, %v1996
  %v1998 = vpop.f32.mrf.mxu0
  %v1999 = vpop.f32.mrf.mxu0
  %v2000 = vadd.f32 %v1459, %v1999
  %v2001 = vpop.f32.mrf.mxu0
  %2002 = vmatprep.mubr.bf16.mxu0 0
  %2003 = vmatmul.mubr.bf16.gmra.mxu0 %v1725
  %v2004 = vpop.f32.mrf.mxu0
  %v2005 = vadd.f32 %v1459, %v2004
  %v2006 = vpop.f32.mrf.mxu0
  %v2007 = vpop.f32.mrf.mxu0
  %v2008 = vadd.f32 %v1459, %v2007
  %v2009 = vpop.f32.mrf.mxu0
  %2010 = vmatprep.mubr.bf16.mxu0 0
  %2011 = vmatmul.mubr.bf16.gmra.mxu0 %v1728
  %v2012 = vpop.f32.mrf.mxu0
  %v2013 = vadd.f32 %v1459, %v2012
  %v2014 = vpop.f32.mrf.mxu0
  %v2015 = vpop.f32.mrf.mxu0
  %v2016 = vadd.f32 %v1459, %v2015
  %v2017 = vpop.f32.mrf.mxu0
  %2018 = vdwg.mxu0
  %v2019 = vpack.c.bf16 %v1768, %v1765
  %v2020 = vpack.c.bf16 %v1776, %v1773
  %v2021 = vpack.c.bf16 %v1784, %v1781
  %v2022 = vpack.c.bf16 %v1792, %v1789
  %v2023 = vpack.c.bf16 %v1800, %v1797
  %v2024 = vpack.c.bf16 %v1808, %v1805
  %v2025 = vpack.c.bf16 %v1816, %v1813
  %v2026 = vpack.c.bf16 %v1824, %v1821
  %v2027 = vpack.c.bf16 %v1832, %v1829
  %v2028 = vpack.c.bf16 %v1840, %v1837
  %v2029 = vpack.c.bf16 %v1848, %v1845
  %v2030 = vpack.c.bf16 %v1856, %v1853
  %v2031 = vpack.c.bf16 %v1864, %v1861
  %v2032 = vpack.c.bf16 %v1872, %v1869
  %v2033 = vpack.c.bf16 %v1880, %v1877
  %v2034 = vpack.c.bf16 %v1888, %v1885
  %v2035 = vpack.c.bf16 %v1896, %v1893
  %v2036 = vpack.c.bf16 %v1904, %v1901
  %v2037 = vpack.c.bf16 %v1912, %v1909
  %v2038 = vpack.c.bf16 %v1920, %v1917
  %v2039 = vpack.c.bf16 %v1928, %v1925
  %v2040 = vpack.c.bf16 %v1936, %v1933
  %v2041 = vpack.c.bf16 %v1944, %v1941
  %v2042 = vpack.c.bf16 %v1952, %v1949
  %v2043 = vpack.c.bf16 %v1960, %v1957
  %v2044 = vpack.c.bf16 %v1968, %v1965
  %v2045 = vpack.c.bf16 %v1976, %v1973
  %v2046 = vpack.c.bf16 %v1984, %v1981
  %v2047 = vpack.c.bf16 %v1992, %v1989
  %v2048 = vpack.c.bf16 %v2000, %v1997
  %v2049 = vpack.c.bf16 %v2008, %v2005
  %v2050 = vpack.c.bf16 %v2016, %v2013
  %v2083 = vunpack.c.l.b16 %v2019
  %v2084 = vunpack.c.h.b16 %v2019
  %v2085 = vunpack.c.l.b16 %v2020
  %v2086 = vunpack.c.h.b16 %v2020
  %v2087 = vunpack.c.l.b16 %v2021
  %v2088 = vunpack.c.h.b16 %v2021
  %v2089 = vunpack.c.l.b16 %v2022
  %v2090 = vunpack.c.h.b16 %v2022
  %v2091 = vunpack.c.l.b16 %v2023
  %v2092 = vunpack.c.h.b16 %v2023
  %v2093 = vunpack.c.l.b16 %v2024
  %v2094 = vunpack.c.h.b16 %v2024
  %v2095 = vunpack.c.l.b16 %v2025
  %v2096 = vunpack.c.h.b16 %v2025
  %v2097 = vunpack.c.l.b16 %v2026
  %v2098 = vunpack.c.h.b16 %v2026
  %v2099 = vunpack.c.l.b16 %v2027
  %v2100 = vunpack.c.h.b16 %v2027
  %v2101 = vunpack.c.l.b16 %v2028
  %v2102 = vunpack.c.h.b16 %v2028
  %v2103 = vunpack.c.l.b16 %v2029
  %v2104 = vunpack.c.h.b16 %v2029
  %v2105 = vunpack.c.l.b16 %v2030
  %v2106 = vunpack.c.h.b16 %v2030
  %v2107 = vunpack.c.l.b16 %v2031
  %v2108 = vunpack.c.h.b16 %v2031
  %v2109 = vunpack.c.l.b16 %v2032
  %v2110 = vunpack.c.h.b16 %v2032
  %v2111 = vunpack.c.l.b16 %v2033
  %v2112 = vunpack.c.h.b16 %v2033
  %v2113 = vunpack.c.l.b16 %v2034
  %v2114 = vunpack.c.h.b16 %v2034
  %v2115 = vunpack.c.l.b16 %v2035
  %v2116 = vunpack.c.h.b16 %v2035
  %v2117 = vunpack.c.l.b16 %v2036
  %v2118 = vunpack.c.h.b16 %v2036
  %v2119 = vunpack.c.l.b16 %v2037
  %v2120 = vunpack.c.h.b16 %v2037
  %v2121 = vunpack.c.l.b16 %v2038
  %v2122 = vunpack.c.h.b16 %v2038
  %v2123 = vunpack.c.l.b16 %v2039
  %v2124 = vunpack.c.h.b16 %v2039
  %v2125 = vunpack.c.l.b16 %v2040
  %v2126 = vunpack.c.h.b16 %v2040
  %v2127 = vunpack.c.l.b16 %v2041
  %v2128 = vunpack.c.h.b16 %v2041
  %v2129 = vunpack.c.l.b16 %v2042
  %v2130 = vunpack.c.h.b16 %v2042
  %v2131 = vunpack.c.l.b16 %v2043
  %v2132 = vunpack.c.h.b16 %v2043
  %v2133 = vunpack.c.l.b16 %v2044
  %v2134 = vunpack.c.h.b16 %v2044
  %v2135 = vunpack.c.l.b16 %v2045
  %v2136 = vunpack.c.h.b16 %v2045
  %v2137 = vunpack.c.l.b16 %v2046
  %v2138 = vunpack.c.h.b16 %v2046
  %v2139 = vunpack.c.l.b16 %v2047
  %v2140 = vunpack.c.h.b16 %v2047
  %v2141 = vunpack.c.l.b16 %v2048
  %v2142 = vunpack.c.h.b16 %v2048
  %v2143 = vunpack.c.l.b16 %v2049
  %v2144 = vunpack.c.h.b16 %v2049
  %v2145 = vunpack.c.l.b16 %v2050
  %v2146 = vunpack.c.h.b16 %v2050
  %v2147 = vpack.c.b16 %v2083, %v2083
  %v2148 = vpack.c.b16 %v2084, %v2084
  %v2149 = vpack.c.b16 %v2085, %v2085
  %v2150 = vpack.c.b16 %v2086, %v2086
  %v2151 = vpack.c.b16 %v2087, %v2087
  %v2152 = vpack.c.b16 %v2088, %v2088
  %v2153 = vpack.c.b16 %v2089, %v2089
  %v2154 = vpack.c.b16 %v2090, %v2090
  %v2155 = vpack.c.b16 %v2091, %v2091
  %v2156 = vpack.c.b16 %v2092, %v2092
  %v2157 = vpack.c.b16 %v2093, %v2093
  %v2158 = vpack.c.b16 %v2094, %v2094
  %v2159 = vpack.c.b16 %v2095, %v2095
  %v2160 = vpack.c.b16 %v2096, %v2096
  %v2161 = vpack.c.b16 %v2097, %v2097
  %v2162 = vpack.c.b16 %v2098, %v2098
  %v2163 = vpack.c.b16 %v2099, %v2099
  %v2164 = vpack.c.b16 %v2100, %v2100
  %v2165 = vpack.c.b16 %v2101, %v2101
  %v2166 = vpack.c.b16 %v2102, %v2102
  %v2167 = vpack.c.b16 %v2103, %v2103
  %v2168 = vpack.c.b16 %v2104, %v2104
  %v2169 = vpack.c.b16 %v2105, %v2105
  %v2170 = vpack.c.b16 %v2106, %v2106
  %v2171 = vpack.c.b16 %v2107, %v2107
  %v2172 = vpack.c.b16 %v2108, %v2108
  %v2173 = vpack.c.b16 %v2109, %v2109
  %v2174 = vpack.c.b16 %v2110, %v2110
  %v2175 = vpack.c.b16 %v2111, %v2111
  %v2176 = vpack.c.b16 %v2112, %v2112
  %v2177 = vpack.c.b16 %v2113, %v2113
  %v2178 = vpack.c.b16 %v2114, %v2114
  %v2179 = vpack.c.b16 %v2115, %v2115
  %v2180 = vpack.c.b16 %v2116, %v2116
  %v2181 = vpack.c.b16 %v2117, %v2117
  %v2182 = vpack.c.b16 %v2118, %v2118
  %v2183 = vpack.c.b16 %v2119, %v2119
  %v2184 = vpack.c.b16 %v2120, %v2120
  %v2185 = vpack.c.b16 %v2121, %v2121
  %v2186 = vpack.c.b16 %v2122, %v2122
  %v2187 = vpack.c.b16 %v2123, %v2123
  %v2188 = vpack.c.b16 %v2124, %v2124
  %v2189 = vpack.c.b16 %v2125, %v2125
  %v2190 = vpack.c.b16 %v2126, %v2126
  %v2191 = vpack.c.b16 %v2127, %v2127
  %v2192 = vpack.c.b16 %v2128, %v2128
  %v2193 = vpack.c.b16 %v2129, %v2129
  %v2194 = vpack.c.b16 %v2130, %v2130
  %v2195 = vpack.c.b16 %v2131, %v2131
  %v2196 = vpack.c.b16 %v2132, %v2132
  %v2197 = vpack.c.b16 %v2133, %v2133
  %v2198 = vpack.c.b16 %v2134, %v2134
  %v2199 = vpack.c.b16 %v2135, %v2135
  %v2200 = vpack.c.b16 %v2136, %v2136
  %v2201 = vpack.c.b16 %v2137, %v2137
  %v2202 = vpack.c.b16 %v2138, %v2138
  %v2203 = vpack.c.b16 %v2139, %v2139
  %v2204 = vpack.c.b16 %v2140, %v2140
  %v2205 = vpack.c.b16 %v2141, %v2141
  %v2206 = vpack.c.b16 %v2142, %v2142
  %v2207 = vpack.c.b16 %v2143, %v2143
  %v2208 = vpack.c.b16 %v2144, %v2144
  %v2209 = vpack.c.b16 %v2145, %v2145
  %v2210 = vpack.c.b16 %v2146, %v2146
  %vm2275 = vcmask 257024
  %2276 = vst.msk [vmem:[%s5] sm:$0xf] %vm2275, %v2147
  %2277 = vst.msk [vmem:[%s5 + $0x4] sm:$0xf] %vm2275, %v2148
  %2278 = vst.msk [vmem:[%s5 + $0x8] sm:$0xf] %vm2275, %v2149
  %2279 = vst.msk [vmem:[%s5 + $0xc] sm:$0xf] %vm2275, %v2150
  %2280 = vst.msk [vmem:[%s5 + $0x10] sm:$0xf] %vm2275, %v2151
  %2281 = vst.msk [vmem:[%s5 + $0x14] sm:$0xf] %vm2275, %v2152
  %2282 = vst.msk [vmem:[%s5 + $0x18] sm:$0xf] %vm2275, %v2153
  %2283 = vst.msk [vmem:[%s5 + $0x1c] sm:$0xf] %vm2275, %v2154
  %2284 = vst.msk [vmem:[%s5 + $0x20] sm:$0xf] %vm2275, %v2155
  %2285 = vst.msk [vmem:[%s5 + $0x24] sm:$0xf] %vm2275, %v2156
  %2286 = vst.msk [vmem:[%s5 + $0x28] sm:$0xf] %vm2275, %v2157
  %2287 = vst.msk [vmem:[%s5 + $0x2c] sm:$0xf] %vm2275, %v2158
  %2288 = vst.msk [vmem:[%s5 + $0x30] sm:$0xf] %vm2275, %v2159
  %2289 = vst.msk [vmem:[%s5 + $0x34] sm:$0xf] %vm2275, %v2160
  %2290 = vst.msk [vmem:[%s5 + $0x38] sm:$0xf] %vm2275, %v2161
  %2291 = vst.msk [vmem:[%s5 + $0x3c] sm:$0xf] %vm2275, %v2162
  %2292 = vst.msk [vmem:[%s5 + $0x40] sm:$0xf] %vm2275, %v2163
  %2293 = vst.msk [vmem:[%s5 + $0x44] sm:$0xf] %vm2275, %v2164
  %2294 = vst.msk [vmem:[%s5 + $0x48] sm:$0xf] %vm2275, %v2165
  %2295 = vst.msk [vmem:[%s5 + $0x4c] sm:$0xf] %vm2275, %v2166
  %2296 = vst.msk [vmem:[%s5 + $0x50] sm:$0xf] %vm2275, %v2167
  %2297 = vst.msk [vmem:[%s5 + $0x54] sm:$0xf] %vm2275, %v2168
  %2298 = vst.msk [vmem:[%s5 + $0x58] sm:$0xf] %vm2275, %v2169
  %2299 = vst.msk [vmem:[%s5 + $0x5c] sm:$0xf] %vm2275, %v2170
  %2300 = vst.msk [vmem:[%s5 + $0x60] sm:$0xf] %vm2275, %v2171
  %2301 = vst.msk [vmem:[%s5 + $0x64] sm:$0xf] %vm2275, %v2172
  %2302 = vst.msk [vmem:[%s5 + $0x68] sm:$0xf] %vm2275, %v2173
  %2303 = vst.msk [vmem:[%s5 + $0x6c] sm:$0xf] %vm2275, %v2174
  %2304 = vst.msk [vmem:[%s5 + $0x70] sm:$0xf] %vm2275, %v2175
  %2305 = vst.msk [vmem:[%s5 + $0x74] sm:$0xf] %vm2275, %v2176
  %2306 = vst.msk [vmem:[%s5 + $0x78] sm:$0xf] %vm2275, %v2177
  %2307 = vst.msk [vmem:[%s5 + $0x7c] sm:$0xf] %vm2275, %v2178
  %2308 = vst.msk [vmem:[%s5 + $0x80] sm:$0xf] %vm2275, %v2179
  %2309 = vst.msk [vmem:[%s5 + $0x84] sm:$0xf] %vm2275, %v2180
  %2310 = vst.msk [vmem:[%s5 + $0x88] sm:$0xf] %vm2275, %v2181
  %2311 = vst.msk [vmem:[%s5 + $0x8c] sm:$0xf] %vm2275, %v2182
  %2312 = vst.msk [vmem:[%s5 + $0x90] sm:$0xf] %vm2275, %v2183
  %2313 = vst.msk [vmem:[%s5 + $0x94] sm:$0xf] %vm2275, %v2184
  %2314 = vst.msk [vmem:[%s5 + $0x98] sm:$0xf] %vm2275, %v2185
  %2315 = vst.msk [vmem:[%s5 + $0x9c] sm:$0xf] %vm2275, %v2186
  %2316 = vst.msk [vmem:[%s5 + $0xa0] sm:$0xf] %vm2275, %v2187
  %2317 = vst.msk [vmem:[%s5 + $0xa4] sm:$0xf] %vm2275, %v2188
  %2318 = vst.msk [vmem:[%s5 + $0xa8] sm:$0xf] %vm2275, %v2189
  %2319 = vst.msk [vmem:[%s5 + $0xac] sm:$0xf] %vm2275, %v2190
  %2320 = vst.msk [vmem:[%s5 + $0xb0] sm:$0xf] %vm2275, %v2191
  %2321 = vst.msk [vmem:[%s5 + $0xb4] sm:$0xf] %vm2275, %v2192
  %2322 = vst.msk [vmem:[%s5 + $0xb8] sm:$0xf] %vm2275, %v2193
  %2323 = vst.msk [vmem:[%s5 + $0xbc] sm:$0xf] %vm2275, %v2194
  %2324 = vst.msk [vmem:[%s5 + $0xc0] sm:$0xf] %vm2275, %v2195
  %2325 = vst.msk [vmem:[%s5 + $0xc4] sm:$0xf] %vm2275, %v2196
  %2326 = vst.msk [vmem:[%s5 + $0xc8] sm:$0xf] %vm2275, %v2197
  %2327 = vst.msk [vmem:[%s5 + $0xcc] sm:$0xf] %vm2275, %v2198
  %2328 = vst.msk [vmem:[%s5 + $0xd0] sm:$0xf] %vm2275, %v2199
  %2329 = vst.msk [vmem:[%s5 + $0xd4] sm:$0xf] %vm2275, %v2200
  %2330 = vst.msk [vmem:[%s5 + $0xd8] sm:$0xf] %vm2275, %v2201
  %2331 = vst.msk [vmem:[%s5 + $0xdc] sm:$0xf] %vm2275, %v2202
  %2332 = vst.msk [vmem:[%s5 + $0xe0] sm:$0xf] %vm2275, %v2203
  %2333 = vst.msk [vmem:[%s5 + $0xe4] sm:$0xf] %vm2275, %v2204
  %2334 = vst.msk [vmem:[%s5 + $0xe8] sm:$0xf] %vm2275, %v2205
  %2335 = vst.msk [vmem:[%s5 + $0xec] sm:$0xf] %vm2275, %v2206
  %2336 = vst.msk [vmem:[%s5 + $0xf0] sm:$0xf] %vm2275, %v2207
  %2337 = vst.msk [vmem:[%s5 + $0xf4] sm:$0xf] %vm2275, %v2208
  %2338 = vst.msk [vmem:[%s5 + $0xf8] sm:$0xf] %vm2275, %v2209
  %2339 = vst.msk [vmem:[%s5 + $0xfc] sm:$0xf] %vm2275, %v2210
  // Predicated region
  $region26: #{tpu_custom_call.1} parent=0 // pred_check
    _
  $region27: #{tpu_custom_call.1} parent=0 // pred_check_branch
    %2341 = sbr.rel (0) target = $region29
  $region28: #{tpu_custom_call.1} parent=0 // pred_region
    _
  $region29: #{tpu_custom_call.1} parent=0 // pred_fallthru
    _
  // Predicated region
  $region30: #{tpu_custom_call.1} parent=0 // pred_check
    _
  $region31: #{tpu_custom_call.1} parent=0 // pred_check_branch
    %2343 = sbr.rel (0) target = $region33
  $region32: #{tpu_custom_call.1} parent=0 // pred_region
    _
  $region33: #{tpu_custom_call.1} parent=0 // pred_fallthru
    _

</llo_original>
